<compile_context>
chip_gen: v7x
topology: tpu7x:2x2x1
jax: 0.10.0
libtpu: 0.0.40
codegen_flags: <defaults>
</compile_context>

<pallas_src>
import jax
import jax.numpy as jnp
from jax.experimental import pallas as pl
from jax.experimental.pallas import tpu as pltpu


def _make_kernel(num_lc):
    """NotearsMLP forward kernel for a fixed number of LocallyConnected layers."""

    def kernel(*refs):
        x_ref, w1t_ref, b1_ref = refs[0], refs[1], refs[2]
        lc_refs = refs[3:3 + 2 * num_lc]
        out_ref = refs[3 + 2 * num_lc]

        # fc1_pos(x) - fc1_neg(x) == x @ (Wp - Wn)^T + (bp - bn): one MXU matmul.
        h = jnp.dot(x_ref[...], w1t_ref[...],
                    preferred_element_type=jnp.float32)
        h = h + b1_ref[...]                                   # f32 [tn, D_pad*m1]

        for l in range(num_lc):
            w_ref = lc_refs[2 * l]        # [G, g*m_in, g*m_out] group block-diag
            b_ref = lc_refs[2 * l + 1]    # [1, D_pad*m_out] f32
            num_groups, k_in, _ = w_ref.shape

            # sigmoid(h) == 0.5*tanh(0.5*h) + 0.5 : a single EUP push per element
            # instead of two (exp + reciprocal) -- EUP is the saturating slot.
            h = 0.5 * jnp.tanh(0.5 * h) + 0.5

            hc = h.astype(w_ref.dtype)    # only the MXU inputs are bf16
            if num_groups == 1:
                h = jnp.dot(hc, w_ref[0], preferred_element_type=jnp.float32)
            else:
                parts = [
                    jnp.dot(hc[:, gi * k_in:(gi + 1) * k_in], w_ref[gi],
                            preferred_element_type=jnp.float32)
                    for gi in range(num_groups)
                ]
                h = jnp.concatenate(parts, axis=-1)
            h = h + b_ref[...]            # f32 bias add

        # Last layer has m_out == 1, so h is [tn, D_pad]: squeeze(dim=2) is implicit.
        # TODO(synk): for production d << 128 at very large n, emit out^T
        # ([D_pad, tn], lane axis = batch) for a lane-dense store and transpose
        # back in the wrapper (biggest lever once the kernel is store-bound).
        out_ref[...] = h.astype(out_ref.dtype)

    return kernel


def _grouped_block_diag(w, d_pad, g):
    """[d, m_in, m_out] -> per-group block-diagonal [G, g*m_in, g*m_out].

    Features are zero-padded from d up to d_pad = G*g so every group holds
    exactly g features; the zero rows/cols keep padded features inert."""
    d, m_in, m_out = w.shape
    G = d_pad // g
    wp = jnp.zeros((d_pad, m_in, m_out), w.dtype).at[:d].set(w)
    wg = wp.reshape(G, g, m_in, m_out)
    eye = jnp.eye(g, dtype=w.dtype)
    return jnp.einsum('ab,gaio->gaibo', eye, wg).reshape(G, g * m_in, g * m_out)


def notears_mlp_forward(x, w1_pos, b1_pos, w1_neg, b1_neg, lc_ws, lc_bs, *,
                        batch_tile=4096, group_k=128, use_bf16=True,
                        batch_axis_semantics="parallel"):
    """Full NotearsMLP forward. Parameter glue (weight combine / block-diag /
    dtype cast) is plain JAX; the whole per-tile forward runs in one Pallas
    kernel.

    batch_tile : batch rows per grid step (large tiles amortize step overhead).
    group_k    : target MXU K-tile per feature group (128 is safe on v5e;
                 v6e/v7x can use 256).
    use_bf16   : cast x / matmul weights to bf16 (f32 accumulation kept).
    batch_axis_semantics : "parallel" (v5e/v6e). Pass pltpu.CORE_PARALLEL on
                 v7x to shard batch tiles across its 2 TensorCores.
    """
    n, d = x.shape
    num_lc = len(lc_ws)
    m1 = w1_pos.shape[0] // d
    w_dtype = jnp.bfloat16 if use_bf16 else jnp.float32

    # --- feature grouping: keep each group's K within one MXU K-tile ----------
    max_m = max([m1] + [int(w.shape[1]) for w in lc_ws]) if num_lc else m1
    g = min(d, max(1, group_k // max_m))
    G = -(-d // g)
    D_pad = G * g

    # --- parameter glue (once, outside the kernel) ----------------------------
    w1t = (w1_pos - w1_neg).T                                   # [d, d*m1]
    b1 = (b1_pos - b1_neg)                                      # [d*m1]
    if D_pad > d:
        w1t = jnp.concatenate(
            [w1t, jnp.zeros((d, (D_pad - d) * m1), w1t.dtype)], axis=1)
        b1 = jnp.concatenate([b1, jnp.zeros(((D_pad - d) * m1,), b1.dtype)])
    w1t = w1t.astype(w_dtype)                                   # [d, D_pad*m1]
    b1 = b1.reshape(1, -1).astype(jnp.float32)                  # [1, D_pad*m1]

    lc_wbd, lc_bcat = [], []
    for w, b in zip(lc_ws, lc_bs):
        lc_wbd.append(
            _grouped_block_diag(w.astype(jnp.float32), D_pad, g).astype(w_dtype))
        m_out = int(b.shape[1])
        bp = jnp.zeros((D_pad, m_out), jnp.float32).at[:d].set(b.astype(jnp.float32))
        lc_bcat.append(bp.reshape(1, -1))                       # [1, D_pad*m_out]

    inputs = [x.astype(w_dtype), w1t, b1]
    for w, b in zip(lc_wbd, lc_bcat):
        inputs += [w, b]

    # --- batch tiling ----------------------------------------------------------
    align = 16 if use_bf16 else 8            # bf16 packs 16 sublanes per vreg
    tn = n if n <= batch_tile else batch_tile
    if tn != n:
        tn = max(align, (tn // align) * align)
    grid = (pl.cdiv(n, tn),)

    # --- VMEM budget & cost estimate ------------------------------------------
    x_itemsize = 2 if use_bf16 else 4
    w_bytes = sum(int(a.size) * a.dtype.itemsize for a in inputs[1:])
    widths = [D_pad * m1] + [D_pad * int(w.shape[2]) for w in lc_ws]
    est = (2 * w_bytes                                  # weights (worst case 2x)
           + 2 * tn * d * x_itemsize + 2 * tn * D_pad * 4   # double-buffered x/out
           + 3 * tn * max(widths) * 4)                  # live f32 intermediates
    vmem_limit = int(min(48 * 1024 * 1024, max(32 * 1024 * 1024, 2 * est)))

    flops = 2 * n * d * (D_pad * m1)
    trans = 0
    for w in lc_ws:
        m_in, m_out = int(w.shape[1]), int(w.shape[2])
        flops += 2 * n * G * (g * m_in) * (g * m_out)
        trans += n * D_pad * m_in
    cost = pl.CostEstimate(
        flops=int(flops), transcendentals=int(trans),
        bytes_accessed=int(n * d * x_itemsize + n * D_pad * 4 + w_bytes))

    kernel = _make_kernel(num_lc)

    def make_call(single_buffer_weights):
        def resident_spec(a):
            nd = a.ndim
            kwargs = {}
            if single_buffer_weights:
                # Constant index map -> resident; single-buffer to halve VMEM.
                kwargs["pipeline_mode"] = pl.Buffered(1)
            return pl.BlockSpec(a.shape, lambda i, _nd=nd: (0,) * _nd, **kwargs)

        in_specs = [pl.BlockSpec((tn, d), lambda i: (i, 0))]     # x: tiled batch
        in_specs += [resident_spec(a) for a in inputs[1:]]       # weights/biases
        out_spec = pl.BlockSpec((tn, D_pad), lambda i: (i, 0))

        return pl.pallas_call(
            kernel,
            out_shape=jax.ShapeDtypeStruct((n, D_pad), jnp.float32),
            grid=grid,
            in_specs=in_specs,
            out_specs=out_spec,
            compiler_params=pltpu.CompilerParams(
                dimension_semantics=(batch_axis_semantics,),
                vmem_limit_bytes=vmem_limit),
            cost_estimate=cost,
        )

    try:
        out = make_call(True)(*inputs)
    except Exception:
        # TODO(synk): pipeline_mode=pl.Buffered(1) unsupported on this JAX build;
        # fall back to default double-buffered resident weights.
        out = make_call(False)(*inputs)

    return out[:, :d] if D_pad > d else out


def reference_forward(x, w1_pos, b1_pos, w1_neg, b1_neg, lc_ws, lc_bs, d, m1):
    """Pure-JAX reference mirroring the PyTorch forward exactly."""
    h = x @ w1_pos.T + b1_pos - (x @ w1_neg.T + b1_neg)      # [n, d*m1]
    h = h.reshape(-1, d, m1)                                  # [n, d, m1]
    for w, b in zip(lc_ws, lc_bs):
        h = jax.nn.sigmoid(h)
        h = jnp.einsum('njm,jmk->njk', h, w) + b[None]        # [n, d, m_out]
    return h[:, :, 0]                                         # squeeze(dim=2)


if __name__ == "__main__":
    # dims = [d, m1, m2, 1]  (NotearsMLP requires dims[-1] == 1)
    dims = [8, 16, 8, 1]
    d, m1 = dims[0], dims[1]
    n = 256

    key = jax.random.PRNGKey(0)
    ks = jax.random.split(key, 16)

    # fc1_pos / fc1_neg: Linear(d, d*m1) -> weight [d*m1, d], bias [d*m1]
    w1_pos = jax.random.uniform(ks[0], (d * m1, d), jnp.float32, -0.3, 0.3)
    b1_pos = jax.random.uniform(ks[1], (d * m1,), jnp.float32, -0.3, 0.3)
    w1_neg = jax.random.uniform(ks[2], (d * m1, d), jnp.float32, -0.3, 0.3)
    b1_neg = jax.random.uniform(ks[3], (d * m1,), jnp.float32, -0.3, 0.3)

    # LocallyConnected layers: weight [d, dims[l+1], dims[l+2]], bias [d, dims[l+2]]
    lc_ws, lc_bs = [], []
    for l in range(len(dims) - 2):
        lc_ws.append(jax.random.uniform(
            ks[4 + 2 * l], (d, dims[l + 1], dims[l + 2]), jnp.float32, -0.3, 0.3))
        lc_bs.append(jax.random.uniform(
            ks[5 + 2 * l], (d, dims[l + 2]), jnp.float32, -0.3, 0.3))

    x = jax.random.normal(ks[12], (n, d), jnp.float32)

    ref = jax.block_until_ready(
        reference_forward(x, w1_pos, b1_pos, w1_neg, b1_neg, lc_ws, lc_bs, d, m1))

    # Default (bf16 operands, large batch tile -> single grid step here).
    out_bf16 = jax.block_until_ready(
        notears_mlp_forward(x, w1_pos, b1_pos, w1_neg, b1_neg, lc_ws, lc_bs))

    # f32 operands with a small batch_tile to exercise the batch-tiled grid path.
    out_f32 = jax.block_until_ready(
        notears_mlp_forward(x, w1_pos, b1_pos, w1_neg, b1_neg, lc_ws, lc_bs,
                            batch_tile=64, use_bf16=False))

    assert out_bf16.shape == (n, d) and out_f32.shape == (n, d)
    assert jnp.allclose(out_f32, ref, rtol=1e-4, atol=1e-4), (
        f"f32 max abs err {jnp.max(jnp.abs(out_f32 - ref))}")
    assert jnp.allclose(out_bf16, ref, rtol=5e-2, atol=5e-2), (
        f"bf16 max abs err {jnp.max(jnp.abs(out_bf16 - ref))}")

    print("KERNEL_OK")
</pallas_src>

<mosaic_0001>
module attributes {stable_mosaic.version = 11 : i64} {
  func.func @kernel(%arg0: i32, %arg1: memref<256x8xbf16, #tpu.memory_space<vmem>>, %arg2: memref<8x128xbf16, #tpu.memory_space<vmem>>, %arg3: memref<1x128xf32, #tpu.memory_space<vmem>>, %arg4: memref<1x128x64xbf16, #tpu.memory_space<vmem>>, %arg5: memref<1x64xf32, #tpu.memory_space<vmem>>, %arg6: memref<1x64x8xbf16, #tpu.memory_space<vmem>>, %arg7: memref<1x8xf32, #tpu.memory_space<vmem>>, %arg8: memref<256x8xf32, #tpu.memory_space<vmem>>) attributes {dimension_semantics = [#tpu.dimension_semantics<parallel>], iteration_bounds = array<i64: 1>, scalar_prefetch = 0 : i64, scratch_operands = 0 : i64, tpu.core_type = #tpu.core_type<tc>, window_params = [{transform_indices = @transform_0, window_bounds = array<i64: 256, 8>}, {pipeline_mode = #tpu.pipeline_mode<synchronous>, transform_indices = @transform_1, window_bounds = array<i64: 8, 128>}, {pipeline_mode = #tpu.pipeline_mode<synchronous>, transform_indices = @transform_2, window_bounds = array<i64: 1, 128>}, {pipeline_mode = #tpu.pipeline_mode<synchronous>, transform_indices = @transform_3, window_bounds = array<i64: 1, 128, 64>}, {pipeline_mode = #tpu.pipeline_mode<synchronous>, transform_indices = @transform_4, window_bounds = array<i64: 1, 64>}, {pipeline_mode = #tpu.pipeline_mode<synchronous>, transform_indices = @transform_5, window_bounds = array<i64: 1, 64, 8>}, {pipeline_mode = #tpu.pipeline_mode<synchronous>, transform_indices = @transform_6, window_bounds = array<i64: 1, 8>}, {transform_indices = @transform_7, window_bounds = array<i64: 256, 8>}]} {
    %c0 = arith.constant 0 : index
    %c0_0 = arith.constant 0 : index
    %0 = vector.load %arg1[%c0, %c0_0] : memref<256x8xbf16, #tpu.memory_space<vmem>>, vector<256x8xbf16>
    %c0_1 = arith.constant 0 : index
    %c0_2 = arith.constant 0 : index
    %1 = vector.load %arg2[%c0_1, %c0_2] : memref<8x128xbf16, #tpu.memory_space<vmem>>, vector<8x128xbf16>
    %cst = arith.constant dense<0.000000e+00> : vector<256x128xf32>
    %2 = tpu.matmul %0, %1, %cst {dimension_numbers = #tpu.dot_dimension_numbers<[1], [0], [0], [1], [0, 0, 1, 1], [], []>} : vector<256x8xbf16>, vector<8x128xbf16>, vector<256x128xf32> -> vector<256x128xf32>
    %c0_3 = arith.constant 0 : index
    %c0_4 = arith.constant 0 : index
    %3 = vector.load %arg3[%c0_3, %c0_4] : memref<1x128xf32, #tpu.memory_space<vmem>>, vector<1x128xf32>
    %4 = vector.broadcast %3 : vector<1x128xf32> to vector<256x128xf32>
    %5 = arith.addf %2, %4 : vector<256x128xf32>
    %cst_5 = arith.constant 5.000000e-01 : f32
    %6 = vector.broadcast %cst_5 : f32 to vector<256x128xf32>
    %7 = arith.mulf %6, %5 : vector<256x128xf32>
    %8 = math.tanh %7 : vector<256x128xf32>
    %cst_6 = arith.constant 5.000000e-01 : f32
    %9 = vector.broadcast %cst_6 : f32 to vector<256x128xf32>
    %10 = arith.mulf %9, %8 : vector<256x128xf32>
    %cst_7 = arith.constant 5.000000e-01 : f32
    %11 = vector.broadcast %cst_7 : f32 to vector<256x128xf32>
    %12 = arith.addf %10, %11 : vector<256x128xf32>
    %13 = arith.truncf %12 : vector<256x128xf32> to vector<256x128xbf16>
    %c0_8 = arith.constant 0 : index
    %c0_9 = arith.constant 0 : index
    %c0_10 = arith.constant 0 : index
    %14 = vector.load %arg4[%c0_8, %c0_9, %c0_10] : memref<1x128x64xbf16, #tpu.memory_space<vmem>>, vector<1x128x64xbf16>
    %15 = vector.shape_cast %14 : vector<1x128x64xbf16> to vector<128x64xbf16>
    %cst_11 = arith.constant dense<0.000000e+00> : vector<256x64xf32>
    %16 = tpu.matmul %13, %15, %cst_11 {dimension_numbers = #tpu.dot_dimension_numbers<[1], [0], [0], [1], [0, 0, 1, 1], [], []>} : vector<256x128xbf16>, vector<128x64xbf16>, vector<256x64xf32> -> vector<256x64xf32>
    %c0_12 = arith.constant 0 : index
    %c0_13 = arith.constant 0 : index
    %17 = vector.load %arg5[%c0_12, %c0_13] : memref<1x64xf32, #tpu.memory_space<vmem>>, vector<1x64xf32>
    %18 = vector.broadcast %17 : vector<1x64xf32> to vector<256x64xf32>
    %19 = arith.addf %16, %18 : vector<256x64xf32>
    %cst_14 = arith.constant 5.000000e-01 : f32
    %20 = vector.broadcast %cst_14 : f32 to vector<256x64xf32>
    %21 = arith.mulf %20, %19 : vector<256x64xf32>
    %22 = math.tanh %21 : vector<256x64xf32>
    %cst_15 = arith.constant 5.000000e-01 : f32
    %23 = vector.broadcast %cst_15 : f32 to vector<256x64xf32>
    %24 = arith.mulf %23, %22 : vector<256x64xf32>
    %cst_16 = arith.constant 5.000000e-01 : f32
    %25 = vector.broadcast %cst_16 : f32 to vector<256x64xf32>
    %26 = arith.addf %24, %25 : vector<256x64xf32>
    %27 = arith.truncf %26 : vector<256x64xf32> to vector<256x64xbf16>
    %c0_17 = arith.constant 0 : index
    %c0_18 = arith.constant 0 : index
    %c0_19 = arith.constant 0 : index
    %28 = vector.load %arg6[%c0_17, %c0_18, %c0_19] : memref<1x64x8xbf16, #tpu.memory_space<vmem>>, vector<1x64x8xbf16>
    %29 = vector.shape_cast %28 : vector<1x64x8xbf16> to vector<64x8xbf16>
    %cst_20 = arith.constant dense<0.000000e+00> : vector<256x8xf32>
    %30 = tpu.matmul %27, %29, %cst_20 {dimension_numbers = #tpu.dot_dimension_numbers<[1], [0], [0], [1], [0, 0, 1, 1], [], []>} : vector<256x64xbf16>, vector<64x8xbf16>, vector<256x8xf32> -> vector<256x8xf32>
    %c0_21 = arith.constant 0 : index
    %c0_22 = arith.constant 0 : index
    %31 = vector.load %arg7[%c0_21, %c0_22] : memref<1x8xf32, #tpu.memory_space<vmem>>, vector<1x8xf32>
    %32 = vector.broadcast %31 : vector<1x8xf32> to vector<256x8xf32>
    %33 = arith.addf %30, %32 : vector<256x8xf32>
    %c0_23 = arith.constant 0 : index
    %c0_24 = arith.constant 0 : index
    %34 = vector.load %arg8[%c0_23, %c0_24] : memref<256x8xf32, #tpu.memory_space<vmem>>, vector<256x8xf32>
    tpu.vector_store %arg8[%c0_23, %c0_24], %33 {strides = array<i32>} : memref<256x8xf32, #tpu.memory_space<vmem>>, vector<256x8xf32>,
    return
  }
  func.func @transform_0(%arg0: i32) -> (i32, i32) {
    %c0_i32 = arith.constant 0 : i32
    %c0_i32_0 = arith.constant 0 : i32
    return %arg0, %c0_i32 : i32, i32
  }
  func.func @transform_1(%arg0: i32) -> (i32, i32) {
    %c0_i32 = arith.constant 0 : i32
    %c0_i32_0 = arith.constant 0 : i32
    %c0_i32_1 = arith.constant 0 : i32
    return %c0_i32, %c0_i32_0 : i32, i32
  }
  func.func @transform_2(%arg0: i32) -> (i32, i32) {
    %c0_i32 = arith.constant 0 : i32
    %c0_i32_0 = arith.constant 0 : i32
    %c0_i32_1 = arith.constant 0 : i32
    return %c0_i32, %c0_i32_0 : i32, i32
  }
  func.func @transform_3(%arg0: i32) -> (i32, i32, i32) {
    %c0_i32 = arith.constant 0 : i32
    %c0_i32_0 = arith.constant 0 : i32
    %c0_i32_1 = arith.constant 0 : i32
    %c0_i32_2 = arith.constant 0 : i32
    return %c0_i32, %c0_i32_0, %c0_i32_1 : i32, i32, i32
  }
  func.func @transform_4(%arg0: i32) -> (i32, i32) {
    %c0_i32 = arith.constant 0 : i32
    %c0_i32_0 = arith.constant 0 : i32
    %c0_i32_1 = arith.constant 0 : i32
    return %c0_i32, %c0_i32_0 : i32, i32
  }
  func.func @transform_5(%arg0: i32) -> (i32, i32, i32) {
    %c0_i32 = arith.constant 0 : i32
    %c0_i32_0 = arith.constant 0 : i32
    %c0_i32_1 = arith.constant 0 : i32
    %c0_i32_2 = arith.constant 0 : i32
    return %c0_i32, %c0_i32_0, %c0_i32_1 : i32, i32, i32
  }
  func.func @transform_6(%arg0: i32) -> (i32, i32) {
    %c0_i32 = arith.constant 0 : i32
    %c0_i32_0 = arith.constant 0 : i32
    %c0_i32_1 = arith.constant 0 : i32
    return %c0_i32, %c0_i32_0 : i32, i32
  }
  func.func @transform_7(%arg0: i32) -> (i32, i32) {
    %c0_i32 = arith.constant 0 : i32
    %c0_i32_0 = arith.constant 0 : i32
    return %arg0, %c0_i32 : i32, i32
  }
}

module attributes {stable_mosaic.version = 11 : i64} {
  func.func @kernel(%arg0: i32, %arg1: memref<256x8xbf16, #tpu.memory_space<vmem>>, %arg2: memref<8x128xbf16, #tpu.memory_space<vmem>>, %arg3: memref<1x128xf32, #tpu.memory_space<vmem>>, %arg4: memref<1x128x64xbf16, #tpu.memory_space<vmem>>, %arg5: memref<1x64xf32, #tpu.memory_space<vmem>>, %arg6: memref<1x64x8xbf16, #tpu.memory_space<vmem>>, %arg7: memref<1x8xf32, #tpu.memory_space<vmem>>, %arg8: memref<256x8xf32, #tpu.memory_space<vmem>>) attributes {dimension_semantics = [#tpu.dimension_semantics<parallel>], iteration_bounds = array<i64: 1>, scalar_prefetch = 0 : i64, scratch_operands = 0 : i64, tpu.core_type = #tpu.core_type<tc>, window_params = [{transform_indices = @transform_0, window_bounds = array<i64: 256, 8>}, {pipeline_mode = #tpu.pipeline_mode<synchronous>, transform_indices = @transform_1, window_bounds = array<i64: 8, 128>}, {pipeline_mode = #tpu.pipeline_mode<synchronous>, transform_indices = @transform_2, window_bounds = array<i64: 1, 128>}, {pipeline_mode = #tpu.pipeline_mode<synchronous>, transform_indices = @transform_3, window_bounds = array<i64: 1, 128, 64>}, {pipeline_mode = #tpu.pipeline_mode<synchronous>, transform_indices = @transform_4, window_bounds = array<i64: 1, 64>}, {pipeline_mode = #tpu.pipeline_mode<synchronous>, transform_indices = @transform_5, window_bounds = array<i64: 1, 64, 8>}, {pipeline_mode = #tpu.pipeline_mode<synchronous>, transform_indices = @transform_6, window_bounds = array<i64: 1, 8>}, {transform_indices = @transform_7, window_bounds = array<i64: 256, 8>}]} {
    %c0 = arith.constant 0 : index
    %c0_0 = arith.constant 0 : index
    %0 = vector.load %arg1[%c0, %c0_0] : memref<256x8xbf16, #tpu.memory_space<vmem>>, vector<256x8xbf16>
    %c0_1 = arith.constant 0 : index
    %c0_2 = arith.constant 0 : index
    %1 = vector.load %arg2[%c0_1, %c0_2] : memref<8x128xbf16, #tpu.memory_space<vmem>>, vector<8x128xbf16>
    %cst = arith.constant dense<0.000000e+00> : vector<256x128xf32>
    %2 = tpu.matmul %0, %1, %cst {dimension_numbers = #tpu.dot_dimension_numbers<[1], [0], [0], [1], [0, 0, 1, 1], [], []>} : vector<256x8xbf16>, vector<8x128xbf16>, vector<256x128xf32> -> vector<256x128xf32>
    %c0_3 = arith.constant 0 : index
    %c0_4 = arith.constant 0 : index
    %3 = vector.load %arg3[%c0_3, %c0_4] : memref<1x128xf32, #tpu.memory_space<vmem>>, vector<1x128xf32>
    %4 = vector.broadcast %3 : vector<1x128xf32> to vector<256x128xf32>
    %5 = arith.addf %2, %4 : vector<256x128xf32>
    %cst_5 = arith.constant 5.000000e-01 : f32
    %6 = vector.broadcast %cst_5 : f32 to vector<256x128xf32>
    %7 = arith.mulf %6, %5 : vector<256x128xf32>
    %8 = math.tanh %7 : vector<256x128xf32>
    %cst_6 = arith.constant 5.000000e-01 : f32
    %9 = vector.broadcast %cst_6 : f32 to vector<256x128xf32>
    %10 = arith.mulf %9, %8 : vector<256x128xf32>
    %cst_7 = arith.constant 5.000000e-01 : f32
    %11 = vector.broadcast %cst_7 : f32 to vector<256x128xf32>
    %12 = arith.addf %10, %11 : vector<256x128xf32>
    %13 = arith.truncf %12 : vector<256x128xf32> to vector<256x128xbf16>
    %c0_8 = arith.constant 0 : index
    %c0_9 = arith.constant 0 : index
    %c0_10 = arith.constant 0 : index
    %14 = vector.load %arg4[%c0_8, %c0_9, %c0_10] : memref<1x128x64xbf16, #tpu.memory_space<vmem>>, vector<1x128x64xbf16>
    %15 = vector.shape_cast %14 : vector<1x128x64xbf16> to vector<128x64xbf16>
    %cst_11 = arith.constant dense<0.000000e+00> : vector<256x64xf32>
    %16 = tpu.matmul %13, %15, %cst_11 {dimension_numbers = #tpu.dot_dimension_numbers<[1], [0], [0], [1], [0, 0, 1, 1], [], []>} : vector<256x128xbf16>, vector<128x64xbf16>, vector<256x64xf32> -> vector<256x64xf32>
    %c0_12 = arith.constant 0 : index
    %c0_13 = arith.constant 0 : index
    %17 = vector.load %arg5[%c0_12, %c0_13] : memref<1x64xf32, #tpu.memory_space<vmem>>, vector<1x64xf32>
    %18 = vector.broadcast %17 : vector<1x64xf32> to vector<256x64xf32>
    %19 = arith.addf %16, %18 : vector<256x64xf32>
    %cst_14 = arith.constant 5.000000e-01 : f32
    %20 = vector.broadcast %cst_14 : f32 to vector<256x64xf32>
    %21 = arith.mulf %20, %19 : vector<256x64xf32>
    %22 = math.tanh %21 : vector<256x64xf32>
    %cst_15 = arith.constant 5.000000e-01 : f32
    %23 = vector.broadcast %cst_15 : f32 to vector<256x64xf32>
    %24 = arith.mulf %23, %22 : vector<256x64xf32>
    %cst_16 = arith.constant 5.000000e-01 : f32
    %25 = vector.broadcast %cst_16 : f32 to vector<256x64xf32>
    %26 = arith.addf %24, %25 : vector<256x64xf32>
    %27 = arith.truncf %26 : vector<256x64xf32> to vector<256x64xbf16>
    %c0_17 = arith.constant 0 : index
    %c0_18 = arith.constant 0 : index
    %c0_19 = arith.constant 0 : index
    %28 = vector.load %arg6[%c0_17, %c0_18, %c0_19] : memref<1x64x8xbf16, #tpu.memory_space<vmem>>, vector<1x64x8xbf16>
    %29 = vector.shape_cast %28 : vector<1x64x8xbf16> to vector<64x8xbf16>
    %cst_20 = arith.constant dense<0.000000e+00> : vector<256x8xf32>
    %30 = tpu.matmul %27, %29, %cst_20 {dimension_numbers = #tpu.dot_dimension_numbers<[1], [0], [0], [1], [0, 0, 1, 1], [], []>} : vector<256x64xbf16>, vector<64x8xbf16>, vector<256x8xf32> -> vector<256x8xf32>
    %c0_21 = arith.constant 0 : index
    %c0_22 = arith.constant 0 : index
    %31 = vector.load %arg7[%c0_21, %c0_22] : memref<1x8xf32, #tpu.memory_space<vmem>>, vector<1x8xf32>
    %32 = vector.broadcast %31 : vector<1x8xf32> to vector<256x8xf32>
    %33 = arith.addf %30, %32 : vector<256x8xf32>
    %c0_23 = arith.constant 0 : index
    %c0_24 = arith.constant 0 : index
    %34 = vector.load %arg8[%c0_23, %c0_24] : memref<256x8xf32, #tpu.memory_space<vmem>>, vector<256x8xf32>
    tpu.vector_store %arg8[%c0_23, %c0_24], %33 {strides = array<i32>} : memref<256x8xf32, #tpu.memory_space<vmem>>, vector<256x8xf32>,
    return
  }
  func.func @transform_0(%arg0: i32) -> (i32, i32) {
    %c0_i32 = arith.constant 0 : i32
    %c0_i32_0 = arith.constant 0 : i32
    return %arg0, %c0_i32 : i32, i32
  }
  func.func @transform_1(%arg0: i32) -> (i32, i32) {
    %c0_i32 = arith.constant 0 : i32
    %c0_i32_0 = arith.constant 0 : i32
    %c0_i32_1 = arith.constant 0 : i32
    return %c0_i32, %c0_i32_0 : i32, i32
  }
  func.func @transform_2(%arg0: i32) -> (i32, i32) {
    %c0_i32 = arith.constant 0 : i32
    %c0_i32_0 = arith.constant 0 : i32
    %c0_i32_1 = arith.constant 0 : i32
    return %c0_i32, %c0_i32_0 : i32, i32
  }
  func.func @transform_3(%arg0: i32) -> (i32, i32, i32) {
    %c0_i32 = arith.constant 0 : i32
    %c0_i32_0 = arith.constant 0 : i32
    %c0_i32_1 = arith.constant 0 : i32
    %c0_i32_2 = arith.constant 0 : i32
    return %c0_i32, %c0_i32_0, %c0_i32_1 : i32, i32, i32
  }
  func.func @transform_4(%arg0: i32) -> (i32, i32) {
    %c0_i32 = arith.constant 0 : i32
    %c0_i32_0 = arith.constant 0 : i32
    %c0_i32_1 = arith.constant 0 : i32
    return %c0_i32, %c0_i32_0 : i32, i32
  }
  func.func @transform_5(%arg0: i32) -> (i32, i32, i32) {
    %c0_i32 = arith.constant 0 : i32
    %c0_i32_0 = arith.constant 0 : i32
    %c0_i32_1 = arith.constant 0 : i32
    %c0_i32_2 = arith.constant 0 : i32
    return %c0_i32, %c0_i32_0, %c0_i32_1 : i32, i32, i32
  }
  func.func @transform_6(%arg0: i32) -> (i32, i32) {
    %c0_i32 = arith.constant 0 : i32
    %c0_i32_0 = arith.constant 0 : i32
    %c0_i32_1 = arith.constant 0 : i32
    return %c0_i32, %c0_i32_0 : i32, i32
  }
  func.func @transform_7(%arg0: i32) -> (i32, i32) {
    %c0_i32 = arith.constant 0 : i32
    %c0_i32_0 = arith.constant 0 : i32
    return %arg0, %c0_i32 : i32, i32
  }
}

</mosaic_0001>

<llo_original>
// kernel: tpu_custom_call.1
$region0: #{tpu_custom_call.1}
  #allocation0 [shape = 'u32[]', space=smem, size = 0x4, offset = 0x4, fixed_abs, tag = 'smem constant byte address 0x4 - core index']
  #allocation1 [shape = 'u32[144,128]{1,0:T(1,128)}', space=vmem, size = 0x12000, scoped, tag = 'internal scratch']
  %s0 = inlined_call_operand.vmem [shape: bf16[256,8], index: 0, kind: input, shape index: {}]
  %s1 = inlined_call_operand.vmem [shape: bf16[8,128], index: 1, kind: input, shape index: {}]
  %s2 = inlined_call_operand.vmem [shape: f32[1,128], index: 2, kind: input, shape index: {}]
  %s3 = inlined_call_operand.vmem [shape: bf16[1,128,64], index: 3, kind: input, shape index: {}]
  %s4 = inlined_call_operand.vmem [shape: f32[1,64], index: 4, kind: input, shape index: {}]
  %s5 = inlined_call_operand.vmem [shape: bf16[1,64,8], index: 5, kind: input, shape index: {}]
  %s6 = inlined_call_operand.vmem [shape: f32[1,8], index: 6, kind: input, shape index: {}]
  %s7 = inlined_call_operand.vmem [shape: f32[256,8], index: 7, kind: output, shape index: {}]
  %s8 = sld [smem:[#allocation0]]
  $region38: #{tpu_custom_call.1} parent=0
    _
  %s10 = ssub.s32 1, %s8
  %s11 = scalar_select 0, %s10, %s8
  // Predicated region
  $region2: #{tpu_custom_call.1} parent=0 // pred_check
    _
  $region3: #{tpu_custom_call.1} parent=0 // pred_check_branch
    %13 = sbr.rel (0) target = $region5
  $region4: #{tpu_custom_call.1} parent=0 // pred_region
    _
  $region5: #{tpu_custom_call.1} parent=0 // pred_fallthru
    _
  // Predicated region
  $region6: #{tpu_custom_call.1} parent=0 // pred_check
    _
  $region7: #{tpu_custom_call.1} parent=0 // pred_check_branch
    %15 = sbr.rel (0) target = $region9
  $region8: #{tpu_custom_call.1} parent=0 // pred_region
    _
  $region9: #{tpu_custom_call.1} parent=0 // pred_fallthru
    _
  // Predicated region
  $region10: #{tpu_custom_call.1} parent=0 // pred_check
    _
  $region11: #{tpu_custom_call.1} parent=0 // pred_check_branch
    %17 = sbr.rel (0) target = $region13
  $region12: #{tpu_custom_call.1} parent=0 // pred_region
    _
  $region13: #{tpu_custom_call.1} parent=0 // pred_fallthru
    _
  // Predicated region
  $region14: #{tpu_custom_call.1} parent=0 // pred_check
    _
  $region15: #{tpu_custom_call.1} parent=0 // pred_check_branch
    %19 = sbr.rel (0) target = $region17
  $region16: #{tpu_custom_call.1} parent=0 // pred_region
    _
  $region17: #{tpu_custom_call.1} parent=0 // pred_fallthru
    _
  // Predicated region
  $region18: #{tpu_custom_call.1} parent=0 // pred_check
    _
  $region19: #{tpu_custom_call.1} parent=0 // pred_check_branch
    %21 = sbr.rel (0) target = $region21
  $region20: #{tpu_custom_call.1} parent=0 // pred_region
    _
  $region21: #{tpu_custom_call.1} parent=0 // pred_fallthru
    _
  // Predicated region
  $region22: #{tpu_custom_call.1} parent=0 // pred_check
    _
  $region23: #{tpu_custom_call.1} parent=0 // pred_check_branch
    %23 = sbr.rel (0) target = $region25
  $region24: #{tpu_custom_call.1} parent=0 // pred_region
    _
  $region25: #{tpu_custom_call.1} parent=0 // pred_fallthru
    _
  // Predicated region
  $region26: #{tpu_custom_call.1} parent=0 // pred_check
    _
  $region27: #{tpu_custom_call.1} parent=0 // pred_check_branch
    %25 = sbr.rel (0) target = $region29
  $region28: #{tpu_custom_call.1} parent=0 // pred_region
    _
  $region29: #{tpu_custom_call.1} parent=0 // pred_fallthru
    _
  %v27 = vld [vmem:[%s0] sm:$0xf]
  %v28 = vld [vmem:[%s0 + $0x4] sm:$0xf]
  %v29 = vld [vmem:[%s0 + $0x8] sm:$0xf]
  %v30 = vld [vmem:[%s0 + $0xc] sm:$0xf]
  %v31 = vld [vmem:[%s0 + $0x10] sm:$0xf]
  %v32 = vld [vmem:[%s0 + $0x14] sm:$0xf]
  %v33 = vld [vmem:[%s0 + $0x18] sm:$0xf]
  %v34 = vld [vmem:[%s0 + $0x1c] sm:$0xf]
  %v35 = vld [vmem:[%s0 + $0x20] sm:$0xf]
  %v36 = vld [vmem:[%s0 + $0x24] sm:$0xf]
  %v37 = vld [vmem:[%s0 + $0x28] sm:$0xf]
  %v38 = vld [vmem:[%s0 + $0x2c] sm:$0xf]
  %v39 = vld [vmem:[%s0 + $0x30] sm:$0xf]
  %v40 = vld [vmem:[%s0 + $0x34] sm:$0xf]
  %v41 = vld [vmem:[%s0 + $0x38] sm:$0xf]
  %v42 = vld [vmem:[%s0 + $0x3c] sm:$0xf]
  %v43 = vld [vmem:[%s0 + $0x40] sm:$0xf]
  %v44 = vld [vmem:[%s0 + $0x44] sm:$0xf]
  %v45 = vld [vmem:[%s0 + $0x48] sm:$0xf]
  %v46 = vld [vmem:[%s0 + $0x4c] sm:$0xf]
  %v47 = vld [vmem:[%s0 + $0x50] sm:$0xf]
  %v48 = vld [vmem:[%s0 + $0x54] sm:$0xf]
  %v49 = vld [vmem:[%s0 + $0x58] sm:$0xf]
  %v50 = vld [vmem:[%s0 + $0x5c] sm:$0xf]
  %v51 = vld [vmem:[%s0 + $0x60] sm:$0xf]
  %v52 = vld [vmem:[%s0 + $0x64] sm:$0xf]
  %v53 = vld [vmem:[%s0 + $0x68] sm:$0xf]
  %v54 = vld [vmem:[%s0 + $0x6c] sm:$0xf]
  %v55 = vld [vmem:[%s0 + $0x70] sm:$0xf]
  %v56 = vld [vmem:[%s0 + $0x74] sm:$0xf]
  %v57 = vld [vmem:[%s0 + $0x78] sm:$0xf]
  %v58 = vld [vmem:[%s0 + $0x7c] sm:$0xf]
  %v59 = vld [vmem:[%s1] sm:$0xf]
  %v60 = vld [vmem:[%s2] sm:$0x1]
  %v62 = vlaneseq
  %v63 = vshrl.u32 %v62, 7
  %v64 = vsub.s32 0, %v63
  %v65 = vrot.slane %v60, %v64
  %v99 = vunpack.c.l.b16 %v27
  %v100 = vunpack.c.l.b16 %v28
  %v101 = vunpack.c.l.b16 %v29
  %v102 = vunpack.c.l.b16 %v30
  %v103 = vunpack.c.l.b16 %v31
  %v104 = vunpack.c.l.b16 %v32
  %v105 = vunpack.c.l.b16 %v33
  %v106 = vunpack.c.l.b16 %v34
  %v107 = vunpack.c.l.b16 %v35
  %v108 = vunpack.c.l.b16 %v36
  %v109 = vunpack.c.l.b16 %v37
  %v110 = vunpack.c.l.b16 %v38
  %v111 = vunpack.c.l.b16 %v39
  %v112 = vunpack.c.l.b16 %v40
  %v113 = vunpack.c.l.b16 %v41
  %v114 = vunpack.c.l.b16 %v42
  %v115 = vunpack.c.l.b16 %v43
  %v116 = vunpack.c.l.b16 %v44
  %v117 = vunpack.c.l.b16 %v45
  %v118 = vunpack.c.l.b16 %v46
  %v119 = vunpack.c.l.b16 %v47
  %v120 = vunpack.c.l.b16 %v48
  %v121 = vunpack.c.l.b16 %v49
  %v122 = vunpack.c.l.b16 %v50
  %v123 = vunpack.c.l.b16 %v51
  %v124 = vunpack.c.l.b16 %v52
  %v125 = vunpack.c.l.b16 %v53
  %v126 = vunpack.c.l.b16 %v54
  %v127 = vunpack.c.l.b16 %v55
  %v128 = vunpack.c.l.b16 %v56
  %v129 = vunpack.c.l.b16 %v57
  %v130 = vunpack.c.l.b16 %v58
  %v131 = vpack.c.b16 %v100, %v99
  %v132 = vpack.c.b16 %v102, %v101
  %v133 = vpack.c.b16 %v104, %v103
  %v134 = vpack.c.b16 %v106, %v105
  %v135 = vpack.c.b16 %v108, %v107
  %v136 = vpack.c.b16 %v110, %v109
  %v137 = vpack.c.b16 %v112, %v111
  %v138 = vpack.c.b16 %v114, %v113
  %v139 = vpack.c.b16 %v116, %v115
  %v140 = vpack.c.b16 %v118, %v117
  %v141 = vpack.c.b16 %v120, %v119
  %v142 = vpack.c.b16 %v122, %v121
  %v143 = vpack.c.b16 %v124, %v123
  %v144 = vpack.c.b16 %v126, %v125
  %v145 = vpack.c.b16 %v128, %v127
  %v146 = vpack.c.b16 %v130, %v129
  %vm147 = vcmask 64512
  %v149 = vsel %vm147, %v131, 0
  %v152 = vsel %vm147, %v132, 0
  %v155 = vsel %vm147, %v133, 0
  %v158 = vsel %vm147, %v134, 0
  %v161 = vsel %vm147, %v135, 0
  %v164 = vsel %vm147, %v136, 0
  %v167 = vsel %vm147, %v137, 0
  %v170 = vsel %vm147, %v138, 0
  %v173 = vsel %vm147, %v139, 0
  %v176 = vsel %vm147, %v140, 0
  %v179 = vsel %vm147, %v141, 0
  %v182 = vsel %vm147, %v142, 0
  %v185 = vsel %vm147, %v143, 0
  %v188 = vsel %vm147, %v144, 0
  %v191 = vsel %vm147, %v145, 0
  %v194 = vsel %vm147, %v146, 0
  %vm196 = vcmask 1043456
  %v198 = vsel %vm196, %v59, 0
  %200 = vmatprep.subr.bf16.mxu0 0
  %201 = vmatpush1.bf16.msra.mxu0 %v198
  %202 = vmatprep.subr.bf16.mxu0 0
  %203 = vmatpush1.bf16.msra.mxu0 0
  %204 = vmatprep.subr.bf16.mxu0 0
  %205 = vmatpush1.bf16.msra.mxu0 0
  %206 = vmatprep.subr.bf16.mxu0 0
  %207 = vmatpush1.bf16.msra.mxu0 0
  %208 = vmatprep.subr.bf16.mxu0 0
  %209 = vmatpush1.bf16.msra.mxu0 0
  %210 = vmatprep.subr.bf16.mxu0 0
  %211 = vmatpush1.bf16.msra.mxu0 0
  %212 = vmatprep.subr.bf16.mxu0 0
  %213 = vmatpush1.bf16.msra.mxu0 0
  %214 = vmatprep.subr.bf16.mxu0 0
  %215 = vmatpush1.bf16.msra.mxu0 0
  %216 = vmatprep.subr.bf16.mxu0 0
  %217 = vmatpush1.bf16.msra.mxu0 0
  %218 = vmatprep.subr.bf16.mxu0 0
  %219 = vmatpush1.bf16.msra.mxu0 0
  %220 = vmatprep.subr.bf16.mxu0 0
  %221 = vmatpush1.bf16.msra.mxu0 0
  %222 = vmatprep.subr.bf16.mxu0 0
  %223 = vmatpush1.bf16.msra.mxu0 0
  %224 = vmatprep.subr.bf16.mxu0 0
  %225 = vmatpush1.bf16.msra.mxu0 0
  %226 = vmatprep.subr.bf16.mxu0 0
  %227 = vmatpush1.bf16.msra.mxu0 0
  %228 = vmatprep.subr.bf16.mxu0 0
  %229 = vmatpush1.bf16.msra.mxu0 0
  %230 = vmatprep.subr.bf16.mxu0 0
  %231 = vmatpush1.bf16.msra.mxu0 0
  %232 = vmatprep.mubr.bf16.mxu0 0
  %233 = vmatmul.mubr.bf16.gmra.mrb[0].mxu0 %v149
  %v234 = vpop.f32.mrb[0].mxu0
  %v235 = vadd.f32 %v65, %v234
  %v236 = vpop.f32.mrb[0].mxu0
  %v237 = vpop.f32.mrb[0].mxu0
  %v238 = vadd.f32 %v65, %v237
  %v239 = vpop.f32.mrb[0].mxu0
  %240 = vmatprep.mubr.bf16.mxu0 0
  %241 = vmatmul.mubr.bf16.gmra.mrb[0].mxu0 %v152
  %v242 = vpop.f32.mrb[0].mxu0
  %v243 = vadd.f32 %v65, %v242
  %v244 = vpop.f32.mrb[0].mxu0
  %v245 = vpop.f32.mrb[0].mxu0
  %v246 = vadd.f32 %v65, %v245
  %v247 = vpop.f32.mrb[0].mxu0
  %248 = vmatprep.mubr.bf16.mxu0 0
  %249 = vmatmul.mubr.bf16.gmra.mrb[0].mxu0 %v155
  %v250 = vpop.f32.mrb[0].mxu0
  %v251 = vadd.f32 %v65, %v250
  %v252 = vpop.f32.mrb[0].mxu0
  %v253 = vpop.f32.mrb[0].mxu0
  %v254 = vadd.f32 %v65, %v253
  %v255 = vpop.f32.mrb[0].mxu0
  %256 = vmatprep.mubr.bf16.mxu0 0
  %257 = vmatmul.mubr.bf16.gmra.mrb[0].mxu0 %v158
  %v258 = vpop.f32.mrb[0].mxu0
  %v259 = vadd.f32 %v65, %v258
  %v260 = vpop.f32.mrb[0].mxu0
  %v261 = vpop.f32.mrb[0].mxu0
  %v262 = vadd.f32 %v65, %v261
  %v263 = vpop.f32.mrb[0].mxu0
  %264 = vmatprep.mubr.bf16.mxu0 0
  %265 = vmatmul.mubr.bf16.gmra.mrb[0].mxu0 %v161
  %v266 = vpop.f32.mrb[0].mxu0
  %v267 = vadd.f32 %v65, %v266
  %v268 = vpop.f32.mrb[0].mxu0
  %v269 = vpop.f32.mrb[0].mxu0
  %v270 = vadd.f32 %v65, %v269
  %v271 = vpop.f32.mrb[0].mxu0
  %272 = vmatprep.mubr.bf16.mxu0 0
  %273 = vmatmul.mubr.bf16.gmra.mrb[0].mxu0 %v164
  %v274 = vpop.f32.mrb[0].mxu0
  %v275 = vadd.f32 %v65, %v274
  %v276 = vpop.f32.mrb[0].mxu0
  %v277 = vpop.f32.mrb[0].mxu0
  %v278 = vadd.f32 %v65, %v277
  %v279 = vpop.f32.mrb[0].mxu0
  %280 = vmatprep.mubr.bf16.mxu0 0
  %281 = vmatmul.mubr.bf16.gmra.mrb[0].mxu0 %v167
  %v282 = vpop.f32.mrb[0].mxu0
  %v283 = vadd.f32 %v65, %v282
  %v284 = vpop.f32.mrb[0].mxu0
  %v285 = vpop.f32.mrb[0].mxu0
  %v286 = vadd.f32 %v65, %v285
  %v287 = vpop.f32.mrb[0].mxu0
  %288 = vmatprep.mubr.bf16.mxu0 0
  %289 = vmatmul.mubr.bf16.gmra.mrb[0].mxu0 %v170
  %v290 = vpop.f32.mrb[0].mxu0
  %v291 = vadd.f32 %v65, %v290
  %v292 = vpop.f32.mrb[0].mxu0
  %v293 = vpop.f32.mrb[0].mxu0
  %v294 = vadd.f32 %v65, %v293
  %v295 = vpop.f32.mrb[0].mxu0
  %296 = vmatprep.mubr.bf16.mxu0 0
  %297 = vmatmul.mubr.bf16.gmra.mrb[0].mxu0 %v173
  %v298 = vpop.f32.mrb[0].mxu0
  %v299 = vadd.f32 %v65, %v298
  %v300 = vpop.f32.mrb[0].mxu0
  %v301 = vpop.f32.mrb[0].mxu0
  %v302 = vadd.f32 %v65, %v301
  %v303 = vpop.f32.mrb[0].mxu0
  %304 = vmatprep.mubr.bf16.mxu0 0
  %305 = vmatmul.mubr.bf16.gmra.mrb[0].mxu0 %v176
  %v306 = vpop.f32.mrb[0].mxu0
  %v307 = vadd.f32 %v65, %v306
  %v308 = vpop.f32.mrb[0].mxu0
  %v309 = vpop.f32.mrb[0].mxu0
  %v310 = vadd.f32 %v65, %v309
  %v311 = vpop.f32.mrb[0].mxu0
  %312 = vmatprep.mubr.bf16.mxu0 0
  %313 = vmatmul.mubr.bf16.gmra.mrb[0].mxu0 %v179
  %v314 = vpop.f32.mrb[0].mxu0
  %v315 = vadd.f32 %v65, %v314
  %v316 = vpop.f32.mrb[0].mxu0
  %v317 = vpop.f32.mrb[0].mxu0
  %v318 = vadd.f32 %v65, %v317
  %v319 = vpop.f32.mrb[0].mxu0
  %320 = vmatprep.mubr.bf16.mxu0 0
  %321 = vmatmul.mubr.bf16.gmra.mrb[0].mxu0 %v182
  %v322 = vpop.f32.mrb[0].mxu0
  %v323 = vadd.f32 %v65, %v322
  %v324 = vpop.f32.mrb[0].mxu0
  %v325 = vpop.f32.mrb[0].mxu0
  %v326 = vadd.f32 %v65, %v325
  %v327 = vpop.f32.mrb[0].mxu0
  %328 = vmatprep.mubr.bf16.mxu0 0
  %329 = vmatmul.mubr.bf16.gmra.mrb[0].mxu0 %v185
  %v330 = vpop.f32.mrb[0].mxu0
  %v331 = vadd.f32 %v65, %v330
  %v332 = vpop.f32.mrb[0].mxu0
  %v333 = vpop.f32.mrb[0].mxu0
  %v334 = vadd.f32 %v65, %v333
  %v335 = vpop.f32.mrb[0].mxu0
  %336 = vmatprep.mubr.bf16.mxu0 0
  %337 = vmatmul.mubr.bf16.gmra.mrb[0].mxu0 %v188
  %v338 = vpop.f32.mrb[0].mxu0
  %v339 = vadd.f32 %v65, %v338
  %v340 = vpop.f32.mrb[0].mxu0
  %v341 = vpop.f32.mrb[0].mxu0
  %v342 = vadd.f32 %v65, %v341
  %v343 = vpop.f32.mrb[0].mxu0
  %344 = vmatprep.mubr.bf16.mxu0 0
  %345 = vmatmul.mubr.bf16.gmra.mrb[0].mxu0 %v191
  %v346 = vpop.f32.mrb[0].mxu0
  %v347 = vadd.f32 %v65, %v346
  %v348 = vpop.f32.mrb[0].mxu0
  %v349 = vpop.f32.mrb[0].mxu0
  %v350 = vadd.f32 %v65, %v349
  %v351 = vpop.f32.mrb[0].mxu0
  %352 = vmatprep.mubr.bf16.mxu0 0
  %353 = vmatmul.mubr.bf16.gmra.mrb[0].mxu0 %v194
  %v354 = vpop.f32.mrb[0].mxu0
  %v355 = vadd.f32 %v65, %v354
  %v356 = vpop.f32.mrb[0].mxu0
  %v357 = vpop.f32.mrb[0].mxu0
  %v358 = vadd.f32 %v65, %v357
  %v359 = vpop.f32.mrb[0].mxu0
  %360 = vdwg.mxu0
  %v361 = vmul.f32 %v235, 0.5
  %v362 = vmul.f32 %v238, 0.5
  %v363 = vmul.f32 %v243, 0.5
  %v364 = vmul.f32 %v246, 0.5
  %v365 = vmul.f32 %v251, 0.5
  %v366 = vmul.f32 %v254, 0.5
  %v367 = vmul.f32 %v259, 0.5
  %v368 = vmul.f32 %v262, 0.5
  %v369 = vmul.f32 %v267, 0.5
  %v370 = vmul.f32 %v270, 0.5
  %v371 = vmul.f32 %v275, 0.5
  %v372 = vmul.f32 %v278, 0.5
  %v373 = vmul.f32 %v283, 0.5
  %v374 = vmul.f32 %v286, 0.5
  %v375 = vmul.f32 %v291, 0.5
  %v376 = vmul.f32 %v294, 0.5
  %v377 = vmul.f32 %v299, 0.5
  %v378 = vmul.f32 %v302, 0.5
  %v379 = vmul.f32 %v307, 0.5
  %v380 = vmul.f32 %v310, 0.5
  %v381 = vmul.f32 %v315, 0.5
  %v382 = vmul.f32 %v318, 0.5
  %v383 = vmul.f32 %v323, 0.5
  %v384 = vmul.f32 %v326, 0.5
  %v385 = vmul.f32 %v331, 0.5
  %v386 = vmul.f32 %v334, 0.5
  %v387 = vmul.f32 %v339, 0.5
  %v388 = vmul.f32 %v342, 0.5
  %v389 = vmul.f32 %v347, 0.5
  %v390 = vmul.f32 %v350, 0.5
  %v391 = vmul.f32 %v355, 0.5
  %v392 = vmul.f32 %v358, 0.5
  %v393 = vtanh.pop %v361
  %v394 = vtanh.pop %v362
  %v395 = vtanh.pop %v363
  %v396 = vtanh.pop %v364
  %v397 = vtanh.pop %v365
  %v398 = vtanh.pop %v366
  %v399 = vtanh.pop %v367
  %v400 = vtanh.pop %v368
  %v401 = vtanh.pop %v369
  %v402 = vtanh.pop %v370
  %v403 = vtanh.pop %v371
  %v404 = vtanh.pop %v372
  %v405 = vtanh.pop %v373
  %v406 = vtanh.pop %v374
  %v407 = vtanh.pop %v375
  %v408 = vtanh.pop %v376
  %v409 = vtanh.pop %v377
  %v410 = vtanh.pop %v378
  %v411 = vtanh.pop %v379
  %v412 = vtanh.pop %v380
  %v413 = vtanh.pop %v381
  %v414 = vtanh.pop %v382
  %v415 = vtanh.pop %v383
  %v416 = vtanh.pop %v384
  %v417 = vtanh.pop %v385
  %v418 = vtanh.pop %v386
  %v419 = vtanh.pop %v387
  %v420 = vtanh.pop %v388
  %v421 = vtanh.pop %v389
  %v422 = vtanh.pop %v390
  %v423 = vtanh.pop %v391
  %v424 = vtanh.pop %v392
  %v425 = vmul.f32 %v393, 0.5
  %v426 = vmul.f32 %v394, 0.5
  %v427 = vmul.f32 %v395, 0.5
  %v428 = vmul.f32 %v396, 0.5
  %v429 = vmul.f32 %v397, 0.5
  %v430 = vmul.f32 %v398, 0.5
  %v431 = vmul.f32 %v399, 0.5
  %v432 = vmul.f32 %v400, 0.5
  %v433 = vmul.f32 %v401, 0.5
  %v434 = vmul.f32 %v402, 0.5
  %v435 = vmul.f32 %v403, 0.5
  %v436 = vmul.f32 %v404, 0.5
  %v437 = vmul.f32 %v405, 0.5
  %v438 = vmul.f32 %v406, 0.5
  %v439 = vmul.f32 %v407, 0.5
  %v440 = vmul.f32 %v408, 0.5
  %v441 = vmul.f32 %v409, 0.5
  %v442 = vmul.f32 %v410, 0.5
  %v443 = vmul.f32 %v411, 0.5
  %v444 = vmul.f32 %v412, 0.5
  %v445 = vmul.f32 %v413, 0.5
  %v446 = vmul.f32 %v414, 0.5
  %v447 = vmul.f32 %v415, 0.5
  %v448 = vmul.f32 %v416, 0.5
  %v449 = vmul.f32 %v417, 0.5
  %v450 = vmul.f32 %v418, 0.5
  %v451 = vmul.f32 %v419, 0.5
  %v452 = vmul.f32 %v420, 0.5
  %v453 = vmul.f32 %v421, 0.5
  %v454 = vmul.f32 %v422, 0.5
  %v455 = vmul.f32 %v423, 0.5
  %v456 = vmul.f32 %v424, 0.5
  %v457 = vadd.f32 %v425, 0.5
  %v458 = vadd.f32 %v426, 0.5
  %v459 = vadd.f32 %v427, 0.5
  %v460 = vadd.f32 %v428, 0.5
  %v461 = vadd.f32 %v429, 0.5
  %v462 = vadd.f32 %v430, 0.5
  %v463 = vadd.f32 %v431, 0.5
  %v464 = vadd.f32 %v432, 0.5
  %v465 = vadd.f32 %v433, 0.5
  %v466 = vadd.f32 %v434, 0.5
  %v467 = vadd.f32 %v435, 0.5
  %v468 = vadd.f32 %v436, 0.5
  %v469 = vadd.f32 %v437, 0.5
  %v470 = vadd.f32 %v438, 0.5
  %v471 = vadd.f32 %v439, 0.5
  %v472 = vadd.f32 %v440, 0.5
  %v473 = vadd.f32 %v441, 0.5
  %v474 = vadd.f32 %v442, 0.5
  %v475 = vadd.f32 %v443, 0.5
  %v476 = vadd.f32 %v444, 0.5
  %v477 = vadd.f32 %v445, 0.5
  %v478 = vadd.f32 %v446, 0.5
  %v479 = vadd.f32 %v447, 0.5
  %v480 = vadd.f32 %v448, 0.5
  %v481 = vadd.f32 %v449, 0.5
  %v482 = vadd.f32 %v450, 0.5
  %v483 = vadd.f32 %v451, 0.5
  %v484 = vadd.f32 %v452, 0.5
  %v485 = vadd.f32 %v453, 0.5
  %v486 = vadd.f32 %v454, 0.5
  %v487 = vadd.f32 %v455, 0.5
  %v488 = vadd.f32 %v456, 0.5
  %v489 = vpack.c.bf16 %v458, %v457
  %v490 = vpack.c.bf16 %v460, %v459
  %v491 = vpack.c.bf16 %v462, %v461
  %v492 = vpack.c.bf16 %v464, %v463
  %v493 = vpack.c.bf16 %v466, %v465
  %v494 = vpack.c.bf16 %v468, %v467
  %v495 = vpack.c.bf16 %v470, %v469
  %v496 = vpack.c.bf16 %v472, %v471
  %v497 = vpack.c.bf16 %v474, %v473
  %v498 = vpack.c.bf16 %v476, %v475
  %v499 = vpack.c.bf16 %v478, %v477
  %v500 = vpack.c.bf16 %v480, %v479
  %v501 = vpack.c.bf16 %v482, %v481
  %v502 = vpack.c.bf16 %v484, %v483
  %v503 = vpack.c.bf16 %v486, %v485
  %v504 = vpack.c.bf16 %v488, %v487
  %v505 = vld [vmem:[%s3] sm:$0xf]
  %v506 = vld [vmem:[%s3 + $0x4] sm:$0xf]
  %v507 = vld [vmem:[%s3 + $0x8] sm:$0xf]
  %v508 = vld [vmem:[%s3 + $0xc] sm:$0xf]
  %v509 = vld [vmem:[%s3 + $0x10] sm:$0xf]
  %v510 = vld [vmem:[%s3 + $0x14] sm:$0xf]
  %v511 = vld [vmem:[%s3 + $0x18] sm:$0xf]
  %v512 = vld [vmem:[%s3 + $0x1c] sm:$0xf]
  %v513 = vld [vmem:[%s3 + $0x20] sm:$0xf]
  %v514 = vld [vmem:[%s3 + $0x24] sm:$0xf]
  %v515 = vld [vmem:[%s3 + $0x28] sm:$0xf]
  %v516 = vld [vmem:[%s3 + $0x2c] sm:$0xf]
  %v517 = vld [vmem:[%s3 + $0x30] sm:$0xf]
  %v518 = vld [vmem:[%s3 + $0x34] sm:$0xf]
  %v519 = vld [vmem:[%s3 + $0x38] sm:$0xf]
  %v520 = vld [vmem:[%s3 + $0x3c] sm:$0xf]
  %v521 = vld [vmem:[%s4] sm:$0x1]
  %v523 = vlaneseq
  %v524 = vshrl.u32 %v523, 7
  %v525 = vsub.s32 0, %v524
  %v526 = vrot.slane %v521, %v525
  %v544 = vunpack.c.l.b16 %v505
  %v545 = vunpack.c.l.b16 %v506
  %v546 = vunpack.c.l.b16 %v507
  %v547 = vunpack.c.l.b16 %v508
  %v548 = vunpack.c.l.b16 %v509
  %v549 = vunpack.c.l.b16 %v510
  %v550 = vunpack.c.l.b16 %v511
  %v551 = vunpack.c.l.b16 %v512
  %v552 = vunpack.c.l.b16 %v513
  %v553 = vunpack.c.l.b16 %v514
  %v554 = vunpack.c.l.b16 %v515
  %v555 = vunpack.c.l.b16 %v516
  %v556 = vunpack.c.l.b16 %v517
  %v557 = vunpack.c.l.b16 %v518
  %v558 = vunpack.c.l.b16 %v519
  %v559 = vunpack.c.l.b16 %v520
  %v560 = vpack.c.b16 %v545, %v544
  %v561 = vpack.c.b16 %v547, %v546
  %v562 = vpack.c.b16 %v549, %v548
  %v563 = vpack.c.b16 %v551, %v550
  %v564 = vpack.c.b16 %v553, %v552
  %v565 = vpack.c.b16 %v555, %v554
  %v566 = vpack.c.b16 %v557, %v556
  %v567 = vpack.c.b16 %v559, %v558
  %576 = vmatprep.subr.bf16.mxu0 0
  %577 = vmatpush1.bf16.msra.mxu0 %v560
  %578 = vmatprep.subr.bf16.mxu0 0
  %579 = vmatpush1.bf16.msra.mxu0 %v561
  %580 = vmatprep.subr.bf16.mxu0 0
  %581 = vmatpush1.bf16.msra.mxu0 %v562
  %582 = vmatprep.subr.bf16.mxu0 0
  %583 = vmatpush1.bf16.msra.mxu0 %v563
  %584 = vmatprep.subr.bf16.mxu0 0
  %585 = vmatpush1.bf16.msra.mxu0 %v564
  %586 = vmatprep.subr.bf16.mxu0 0
  %587 = vmatpush1.bf16.msra.mxu0 %v565
  %588 = vmatprep.subr.bf16.mxu0 0
  %589 = vmatpush1.bf16.msra.mxu0 %v566
  %590 = vmatprep.subr.bf16.mxu0 0
  %591 = vmatpush1.bf16.msra.mxu0 %v567
  %592 = vmatprep.subr.bf16.mxu0 0
  %593 = vmatpush1.bf16.msra.mxu0 0
  %594 = vmatprep.subr.bf16.mxu0 0
  %595 = vmatpush1.bf16.msra.mxu0 0
  %596 = vmatprep.subr.bf16.mxu0 0
  %597 = vmatpush1.bf16.msra.mxu0 0
  %598 = vmatprep.subr.bf16.mxu0 0
  %599 = vmatpush1.bf16.msra.mxu0 0
  %600 = vmatprep.subr.bf16.mxu0 0
  %601 = vmatpush1.bf16.msra.mxu0 0
  %602 = vmatprep.subr.bf16.mxu0 0
  %603 = vmatpush1.bf16.msra.mxu0 0
  %604 = vmatprep.subr.bf16.mxu0 0
  %605 = vmatpush1.bf16.msra.mxu0 0
  %606 = vmatprep.subr.bf16.mxu0 0
  %607 = vmatpush1.bf16.msra.mxu0 0
  %608 = vmatprep.mubr.bf16.mxu0 0
  %609 = vmatmul.mubr.bf16.gmra.mrb[0].mxu0 %v489
  %v610 = vpop.f32.mrb[0].mxu0
  %v611 = vadd.f32 %v526, %v610
  %v612 = vpop.f32.mrb[0].mxu0
  %v613 = vpop.f32.mrb[0].mxu0
  %v614 = vadd.f32 %v526, %v613
  %v615 = vpop.f32.mrb[0].mxu0
  %616 = vmatprep.mubr.bf16.mxu0 0
  %617 = vmatmul.mubr.bf16.gmra.mrb[0].mxu0 %v490
  %v618 = vpop.f32.mrb[0].mxu0
  %v619 = vadd.f32 %v526, %v618
  %v620 = vpop.f32.mrb[0].mxu0
  %v621 = vpop.f32.mrb[0].mxu0
  %v622 = vadd.f32 %v526, %v621
  %v623 = vpop.f32.mrb[0].mxu0
  %624 = vmatprep.mubr.bf16.mxu0 0
  %625 = vmatmul.mubr.bf16.gmra.mrb[0].mxu0 %v491
  %v626 = vpop.f32.mrb[0].mxu0
  %v627 = vadd.f32 %v526, %v626
  %v628 = vpop.f32.mrb[0].mxu0
  %v629 = vpop.f32.mrb[0].mxu0
  %v630 = vadd.f32 %v526, %v629
  %v631 = vpop.f32.mrb[0].mxu0
  %632 = vmatprep.mubr.bf16.mxu0 0
  %633 = vmatmul.mubr.bf16.gmra.mrb[0].mxu0 %v492
  %v634 = vpop.f32.mrb[0].mxu0
  %v635 = vadd.f32 %v526, %v634
  %v636 = vpop.f32.mrb[0].mxu0
  %v637 = vpop.f32.mrb[0].mxu0
  %v638 = vadd.f32 %v526, %v637
  %v639 = vpop.f32.mrb[0].mxu0
  %640 = vmatprep.mubr.bf16.mxu0 0
  %641 = vmatmul.mubr.bf16.gmra.mrb[0].mxu0 %v493
  %v642 = vpop.f32.mrb[0].mxu0
  %v643 = vadd.f32 %v526, %v642
  %v644 = vpop.f32.mrb[0].mxu0
  %v645 = vpop.f32.mrb[0].mxu0
  %v646 = vadd.f32 %v526, %v645
  %v647 = vpop.f32.mrb[0].mxu0
  %648 = vmatprep.mubr.bf16.mxu0 0
  %649 = vmatmul.mubr.bf16.gmra.mrb[0].mxu0 %v494
  %v650 = vpop.f32.mrb[0].mxu0
  %v651 = vadd.f32 %v526, %v650
  %v652 = vpop.f32.mrb[0].mxu0
  %v653 = vpop.f32.mrb[0].mxu0
  %v654 = vadd.f32 %v526, %v653
  %v655 = vpop.f32.mrb[0].mxu0
  %656 = vmatprep.mubr.bf16.mxu0 0
  %657 = vmatmul.mubr.bf16.gmra.mrb[0].mxu0 %v495
  %v658 = vpop.f32.mrb[0].mxu0
  %v659 = vadd.f32 %v526, %v658
  %v660 = vpop.f32.mrb[0].mxu0
  %v661 = vpop.f32.mrb[0].mxu0
  %v662 = vadd.f32 %v526, %v661
  %v663 = vpop.f32.mrb[0].mxu0
  %664 = vmatprep.mubr.bf16.mxu0 0
  %665 = vmatmul.mubr.bf16.gmra.mrb[0].mxu0 %v496
  %v666 = vpop.f32.mrb[0].mxu0
  %v667 = vadd.f32 %v526, %v666
  %v668 = vpop.f32.mrb[0].mxu0
  %v669 = vpop.f32.mrb[0].mxu0
  %v670 = vadd.f32 %v526, %v669
  %v671 = vpop.f32.mrb[0].mxu0
  %672 = vmatprep.mubr.bf16.mxu0 0
  %673 = vmatmul.mubr.bf16.gmra.mrb[0].mxu0 %v497
  %v674 = vpop.f32.mrb[0].mxu0
  %v675 = vadd.f32 %v526, %v674
  %v676 = vpop.f32.mrb[0].mxu0
  %v677 = vpop.f32.mrb[0].mxu0
  %v678 = vadd.f32 %v526, %v677
  %v679 = vpop.f32.mrb[0].mxu0
  %680 = vmatprep.mubr.bf16.mxu0 0
  %681 = vmatmul.mubr.bf16.gmra.mrb[0].mxu0 %v498
  %v682 = vpop.f32.mrb[0].mxu0
  %v683 = vadd.f32 %v526, %v682
  %v684 = vpop.f32.mrb[0].mxu0
  %v685 = vpop.f32.mrb[0].mxu0
  %v686 = vadd.f32 %v526, %v685
  %v687 = vpop.f32.mrb[0].mxu0
  %688 = vmatprep.mubr.bf16.mxu0 0
  %689 = vmatmul.mubr.bf16.gmra.mrb[0].mxu0 %v499
  %v690 = vpop.f32.mrb[0].mxu0
  %v691 = vadd.f32 %v526, %v690
  %v692 = vpop.f32.mrb[0].mxu0
  %v693 = vpop.f32.mrb[0].mxu0
  %v694 = vadd.f32 %v526, %v693
  %v695 = vpop.f32.mrb[0].mxu0
  %696 = vmatprep.mubr.bf16.mxu0 0
  %697 = vmatmul.mubr.bf16.gmra.mrb[0].mxu0 %v500
  %v698 = vpop.f32.mrb[0].mxu0
  %v699 = vadd.f32 %v526, %v698
  %v700 = vpop.f32.mrb[0].mxu0
  %v701 = vpop.f32.mrb[0].mxu0
  %v702 = vadd.f32 %v526, %v701
  %v703 = vpop.f32.mrb[0].mxu0
  %704 = vmatprep.mubr.bf16.mxu0 0
  %705 = vmatmul.mubr.bf16.gmra.mrb[0].mxu0 %v501
  %v706 = vpop.f32.mrb[0].mxu0
  %v707 = vadd.f32 %v526, %v706
  %v708 = vpop.f32.mrb[0].mxu0
  %v709 = vpop.f32.mrb[0].mxu0
  %v710 = vadd.f32 %v526, %v709
  %v711 = vpop.f32.mrb[0].mxu0
  %712 = vmatprep.mubr.bf16.mxu0 0
  %713 = vmatmul.mubr.bf16.gmra.mrb[0].mxu0 %v502
  %v714 = vpop.f32.mrb[0].mxu0
  %v715 = vadd.f32 %v526, %v714
  %v716 = vpop.f32.mrb[0].mxu0
  %v717 = vpop.f32.mrb[0].mxu0
  %v718 = vadd.f32 %v526, %v717
  %v719 = vpop.f32.mrb[0].mxu0
  %720 = vmatprep.mubr.bf16.mxu0 0
  %721 = vmatmul.mubr.bf16.gmra.mrb[0].mxu0 %v503
  %v722 = vpop.f32.mrb[0].mxu0
  %v723 = vadd.f32 %v526, %v722
  %v724 = vpop.f32.mrb[0].mxu0
  %v725 = vpop.f32.mrb[0].mxu0
  %v726 = vadd.f32 %v526, %v725
  %v727 = vpop.f32.mrb[0].mxu0
  %728 = vmatprep.mubr.bf16.mxu0 0
  %729 = vmatmul.mubr.bf16.gmra.mrb[0].mxu0 %v504
  %v730 = vpop.f32.mrb[0].mxu0
  %v731 = vadd.f32 %v526, %v730
  %v732 = vpop.f32.mrb[0].mxu0
  %v733 = vpop.f32.mrb[0].mxu0
  %v734 = vadd.f32 %v526, %v733
  %v735 = vpop.f32.mrb[0].mxu0
  %736 = vdwg.mxu0
  %v737 = vmul.f32 %v611, 0.5
  %v738 = vmul.f32 %v614, 0.5
  %v739 = vmul.f32 %v619, 0.5
  %v740 = vmul.f32 %v622, 0.5
  %v741 = vmul.f32 %v627, 0.5
  %v742 = vmul.f32 %v630, 0.5
  %v743 = vmul.f32 %v635, 0.5
  %v744 = vmul.f32 %v638, 0.5
  %v745 = vmul.f32 %v643, 0.5
  %v746 = vmul.f32 %v646, 0.5
  %v747 = vmul.f32 %v651, 0.5
  %v748 = vmul.f32 %v654, 0.5
  %v749 = vmul.f32 %v659, 0.5
  %v750 = vmul.f32 %v662, 0.5
  %v751 = vmul.f32 %v667, 0.5
  %v752 = vmul.f32 %v670, 0.5
  %v753 = vmul.f32 %v675, 0.5
  %v754 = vmul.f32 %v678, 0.5
  %v755 = vmul.f32 %v683, 0.5
  %v756 = vmul.f32 %v686, 0.5
  %v757 = vmul.f32 %v691, 0.5
  %v758 = vmul.f32 %v694, 0.5
  %v759 = vmul.f32 %v699, 0.5
  %v760 = vmul.f32 %v702, 0.5
  %v761 = vmul.f32 %v707, 0.5
  %v762 = vmul.f32 %v710, 0.5
  %v763 = vmul.f32 %v715, 0.5
  %v764 = vmul.f32 %v718, 0.5
  %v765 = vmul.f32 %v723, 0.5
  %v766 = vmul.f32 %v726, 0.5
  %v767 = vmul.f32 %v731, 0.5
  %v768 = vmul.f32 %v734, 0.5
  %v769 = vtanh.pop %v737
  %v770 = vtanh.pop %v738
  %v771 = vtanh.pop %v739
  %v772 = vtanh.pop %v740
  %v773 = vtanh.pop %v741
  %v774 = vtanh.pop %v742
  %v775 = vtanh.pop %v743
  %v776 = vtanh.pop %v744
  %v777 = vtanh.pop %v745
  %v778 = vtanh.pop %v746
  %v779 = vtanh.pop %v747
  %v780 = vtanh.pop %v748
  %v781 = vtanh.pop %v749
  %v782 = vtanh.pop %v750
  %v783 = vtanh.pop %v751
  %v784 = vtanh.pop %v752
  %v785 = vtanh.pop %v753
  %v786 = vtanh.pop %v754
  %v787 = vtanh.pop %v755
  %v788 = vtanh.pop %v756
  %v789 = vtanh.pop %v757
  %v790 = vtanh.pop %v758
  %v791 = vtanh.pop %v759
  %v792 = vtanh.pop %v760
  %v793 = vtanh.pop %v761
  %v794 = vtanh.pop %v762
  %v795 = vtanh.pop %v763
  %v796 = vtanh.pop %v764
  %v797 = vtanh.pop %v765
  %v798 = vtanh.pop %v766
  %v799 = vtanh.pop %v767
  %v800 = vtanh.pop %v768
  %v801 = vmul.f32 %v769, 0.5
  %v802 = vmul.f32 %v770, 0.5
  %v803 = vmul.f32 %v771, 0.5
  %v804 = vmul.f32 %v772, 0.5
  %v805 = vmul.f32 %v773, 0.5
  %v806 = vmul.f32 %v774, 0.5
  %v807 = vmul.f32 %v775, 0.5
  %v808 = vmul.f32 %v776, 0.5
  %v809 = vmul.f32 %v777, 0.5
  %v810 = vmul.f32 %v778, 0.5
  %v811 = vmul.f32 %v779, 0.5
  %v812 = vmul.f32 %v780, 0.5
  %v813 = vmul.f32 %v781, 0.5
  %v814 = vmul.f32 %v782, 0.5
  %v815 = vmul.f32 %v783, 0.5
  %v816 = vmul.f32 %v784, 0.5
  %v817 = vmul.f32 %v785, 0.5
  %v818 = vmul.f32 %v786, 0.5
  %v819 = vmul.f32 %v787, 0.5
  %v820 = vmul.f32 %v788, 0.5
  %v821 = vmul.f32 %v789, 0.5
  %v822 = vmul.f32 %v790, 0.5
  %v823 = vmul.f32 %v791, 0.5
  %v824 = vmul.f32 %v792, 0.5
  %v825 = vmul.f32 %v793, 0.5
  %v826 = vmul.f32 %v794, 0.5
  %v827 = vmul.f32 %v795, 0.5
  %v828 = vmul.f32 %v796, 0.5
  %v829 = vmul.f32 %v797, 0.5
  %v830 = vmul.f32 %v798, 0.5
  %v831 = vmul.f32 %v799, 0.5
  %v832 = vmul.f32 %v800, 0.5
  %v833 = vadd.f32 %v801, 0.5
  %v834 = vadd.f32 %v802, 0.5
  %v835 = vadd.f32 %v803, 0.5
  %v836 = vadd.f32 %v804, 0.5
  %v837 = vadd.f32 %v805, 0.5
  %v838 = vadd.f32 %v806, 0.5
  %v839 = vadd.f32 %v807, 0.5
  %v840 = vadd.f32 %v808, 0.5
  %v841 = vadd.f32 %v809, 0.5
  %v842 = vadd.f32 %v810, 0.5
  %v843 = vadd.f32 %v811, 0.5
  %v844 = vadd.f32 %v812, 0.5
  %v845 = vadd.f32 %v813, 0.5
  %v846 = vadd.f32 %v814, 0.5
  %v847 = vadd.f32 %v815, 0.5
  %v848 = vadd.f32 %v816, 0.5
  %v849 = vadd.f32 %v817, 0.5
  %v850 = vadd.f32 %v818, 0.5
  %v851 = vadd.f32 %v819, 0.5
  %v852 = vadd.f32 %v820, 0.5
  %v853 = vadd.f32 %v821, 0.5
  %v854 = vadd.f32 %v822, 0.5
  %v855 = vadd.f32 %v823, 0.5
  %v856 = vadd.f32 %v824, 0.5
  %v857 = vadd.f32 %v825, 0.5
  %v858 = vadd.f32 %v826, 0.5
  %v859 = vadd.f32 %v827, 0.5
  %v860 = vadd.f32 %v828, 0.5
  %v861 = vadd.f32 %v829, 0.5
  %v862 = vadd.f32 %v830, 0.5
  %v863 = vadd.f32 %v831, 0.5
  %v864 = vadd.f32 %v832, 0.5
  %v865 = vpack.c.bf16 %v834, %v833
  %v866 = vpack.c.bf16 %v836, %v835
  %v867 = vpack.c.bf16 %v838, %v837
  %v868 = vpack.c.bf16 %v840, %v839
  %v869 = vpack.c.bf16 %v842, %v841
  %v870 = vpack.c.bf16 %v844, %v843
  %v871 = vpack.c.bf16 %v846, %v845
  %v872 = vpack.c.bf16 %v848, %v847
  %v873 = vpack.c.bf16 %v850, %v849
  %v874 = vpack.c.bf16 %v852, %v851
  %v875 = vpack.c.bf16 %v854, %v853
  %v876 = vpack.c.bf16 %v856, %v855
  %v877 = vpack.c.bf16 %v858, %v857
  %v878 = vpack.c.bf16 %v860, %v859
  %v879 = vpack.c.bf16 %v862, %v861
  %v880 = vpack.c.bf16 %v864, %v863
  %v881 = vld [vmem:[%s5] sm:$0xf]
  %v882 = vld [vmem:[%s5 + $0x4] sm:$0xf]
  %v883 = vld [vmem:[%s5 + $0x8] sm:$0xf]
  %v884 = vld [vmem:[%s5 + $0xc] sm:$0xf]
  %v885 = vld [vmem:[%s5 + $0x10] sm:$0xf]
  %v886 = vld [vmem:[%s5 + $0x14] sm:$0xf]
  %v887 = vld [vmem:[%s5 + $0x18] sm:$0xf]
  %v888 = vld [vmem:[%s5 + $0x1c] sm:$0xf]
  %v889 = vld [vmem:[%s6] sm:$0x1]
  %v891 = vlaneseq
  %v892 = vshrl.u32 %v891, 7
  %v893 = vsub.s32 0, %v892
  %v894 = vrot.slane %v889, %v893
  %v904 = vunpack.c.l.b16 %v881
  %v905 = vunpack.c.l.b16 %v882
  %v906 = vunpack.c.l.b16 %v883
  %v907 = vunpack.c.l.b16 %v884
  %v908 = vunpack.c.l.b16 %v885
  %v909 = vunpack.c.l.b16 %v886
  %v910 = vunpack.c.l.b16 %v887
  %v911 = vunpack.c.l.b16 %v888
  %v912 = vpack.c.b16 %v905, %v904
  %v913 = vpack.c.b16 %v907, %v906
  %v914 = vpack.c.b16 %v909, %v908
  %v915 = vpack.c.b16 %v911, %v910
  %vm920 = vcmask 523264
  %v922 = vsel %vm920, %v865, 0
  %v925 = vsel %vm920, %v866, 0
  %v928 = vsel %vm920, %v867, 0
  %v931 = vsel %vm920, %v868, 0
  %v934 = vsel %vm920, %v869, 0
  %v937 = vsel %vm920, %v870, 0
  %v940 = vsel %vm920, %v871, 0
  %v943 = vsel %vm920, %v872, 0
  %v946 = vsel %vm920, %v873, 0
  %v949 = vsel %vm920, %v874, 0
  %v952 = vsel %vm920, %v875, 0
  %v955 = vsel %vm920, %v876, 0
  %v958 = vsel %vm920, %v877, 0
  %v961 = vsel %vm920, %v878, 0
  %v964 = vsel %vm920, %v879, 0
  %v967 = vsel %vm920, %v880, 0
  %969 = vmatprep.subr.bf16.mxu0 0
  %970 = vmatpush1.bf16.msra.mxu0 %v912
  %971 = vmatprep.subr.bf16.mxu0 0
  %972 = vmatpush1.bf16.msra.mxu0 %v913
  %973 = vmatprep.subr.bf16.mxu0 0
  %974 = vmatpush1.bf16.msra.mxu0 %v914
  %975 = vmatprep.subr.bf16.mxu0 0
  %976 = vmatpush1.bf16.msra.mxu0 %v915
  %977 = vmatprep.subr.bf16.mxu0 0
  %978 = vmatpush1.bf16.msra.mxu0 0
  %979 = vmatprep.subr.bf16.mxu0 0
  %980 = vmatpush1.bf16.msra.mxu0 0
  %981 = vmatprep.subr.bf16.mxu0 0
  %982 = vmatpush1.bf16.msra.mxu0 0
  %983 = vmatprep.subr.bf16.mxu0 0
  %984 = vmatpush1.bf16.msra.mxu0 0
  %985 = vmatprep.subr.bf16.mxu0 0
  %986 = vmatpush1.bf16.msra.mxu0 0
  %987 = vmatprep.subr.bf16.mxu0 0
  %988 = vmatpush1.bf16.msra.mxu0 0
  %989 = vmatprep.subr.bf16.mxu0 0
  %990 = vmatpush1.bf16.msra.mxu0 0
  %991 = vmatprep.subr.bf16.mxu0 0
  %992 = vmatpush1.bf16.msra.mxu0 0
  %993 = vmatprep.subr.bf16.mxu0 0
  %994 = vmatpush1.bf16.msra.mxu0 0
  %995 = vmatprep.subr.bf16.mxu0 0
  %996 = vmatpush1.bf16.msra.mxu0 0
  %997 = vmatprep.subr.bf16.mxu0 0
  %998 = vmatpush1.bf16.msra.mxu0 0
  %999 = vmatprep.subr.bf16.mxu0 0
  %1000 = vmatpush1.bf16.msra.mxu0 0
  %1001 = vmatprep.mubr.bf16.mxu0 0
  %1002 = vmatmul.mubr.bf16.gmra.mrb[0].mxu0 %v922
  %v1003 = vpop.f32.mrb[0].mxu0
  %v1004 = vadd.f32 %v894, %v1003
  %v1005 = vpop.f32.mrb[0].mxu0
  %v1006 = vpop.f32.mrb[0].mxu0
  %v1007 = vadd.f32 %v894, %v1006
  %v1008 = vpop.f32.mrb[0].mxu0
  %1009 = vmatprep.mubr.bf16.mxu0 0
  %1010 = vmatmul.mubr.bf16.gmra.mrb[0].mxu0 %v925
  %v1011 = vpop.f32.mrb[0].mxu0
  %v1012 = vadd.f32 %v894, %v1011
  %v1013 = vpop.f32.mrb[0].mxu0
  %v1014 = vpop.f32.mrb[0].mxu0
  %v1015 = vadd.f32 %v894, %v1014
  %v1016 = vpop.f32.mrb[0].mxu0
  %1017 = vmatprep.mubr.bf16.mxu0 0
  %1018 = vmatmul.mubr.bf16.gmra.mrb[0].mxu0 %v928
  %v1019 = vpop.f32.mrb[0].mxu0
  %v1020 = vadd.f32 %v894, %v1019
  %v1021 = vpop.f32.mrb[0].mxu0
  %v1022 = vpop.f32.mrb[0].mxu0
  %v1023 = vadd.f32 %v894, %v1022
  %v1024 = vpop.f32.mrb[0].mxu0
  %1025 = vmatprep.mubr.bf16.mxu0 0
  %1026 = vmatmul.mubr.bf16.gmra.mrb[0].mxu0 %v931
  %v1027 = vpop.f32.mrb[0].mxu0
  %v1028 = vadd.f32 %v894, %v1027
  %v1029 = vpop.f32.mrb[0].mxu0
  %v1030 = vpop.f32.mrb[0].mxu0
  %v1031 = vadd.f32 %v894, %v1030
  %v1032 = vpop.f32.mrb[0].mxu0
  %1033 = vmatprep.mubr.bf16.mxu0 0
  %1034 = vmatmul.mubr.bf16.gmra.mrb[0].mxu0 %v934
  %v1035 = vpop.f32.mrb[0].mxu0
  %v1036 = vadd.f32 %v894, %v1035
  %v1037 = vpop.f32.mrb[0].mxu0
  %v1038 = vpop.f32.mrb[0].mxu0
  %v1039 = vadd.f32 %v894, %v1038
  %v1040 = vpop.f32.mrb[0].mxu0
  %1041 = vmatprep.mubr.bf16.mxu0 0
  %1042 = vmatmul.mubr.bf16.gmra.mrb[0].mxu0 %v937
  %v1043 = vpop.f32.mrb[0].mxu0
  %v1044 = vadd.f32 %v894, %v1043
  %v1045 = vpop.f32.mrb[0].mxu0
  %v1046 = vpop.f32.mrb[0].mxu0
  %v1047 = vadd.f32 %v894, %v1046
  %v1048 = vpop.f32.mrb[0].mxu0
  %1049 = vmatprep.mubr.bf16.mxu0 0
  %1050 = vmatmul.mubr.bf16.gmra.mrb[0].mxu0 %v940
  %v1051 = vpop.f32.mrb[0].mxu0
  %v1052 = vadd.f32 %v894, %v1051
  %v1053 = vpop.f32.mrb[0].mxu0
  %v1054 = vpop.f32.mrb[0].mxu0
  %v1055 = vadd.f32 %v894, %v1054
  %v1056 = vpop.f32.mrb[0].mxu0
  %1057 = vmatprep.mubr.bf16.mxu0 0
  %1058 = vmatmul.mubr.bf16.gmra.mrb[0].mxu0 %v943
  %v1059 = vpop.f32.mrb[0].mxu0
  %v1060 = vadd.f32 %v894, %v1059
  %v1061 = vpop.f32.mrb[0].mxu0
  %v1062 = vpop.f32.mrb[0].mxu0
  %v1063 = vadd.f32 %v894, %v1062
  %v1064 = vpop.f32.mrb[0].mxu0
  %1065 = vmatprep.mubr.bf16.mxu0 0
  %1066 = vmatmul.mubr.bf16.gmra.mrb[0].mxu0 %v946
  %v1067 = vpop.f32.mrb[0].mxu0
  %v1068 = vadd.f32 %v894, %v1067
  %v1069 = vpop.f32.mrb[0].mxu0
  %v1070 = vpop.f32.mrb[0].mxu0
  %v1071 = vadd.f32 %v894, %v1070
  %v1072 = vpop.f32.mrb[0].mxu0
  %1073 = vmatprep.mubr.bf16.mxu0 0
  %1074 = vmatmul.mubr.bf16.gmra.mrb[0].mxu0 %v949
  %v1075 = vpop.f32.mrb[0].mxu0
  %v1076 = vadd.f32 %v894, %v1075
  %v1077 = vpop.f32.mrb[0].mxu0
  %v1078 = vpop.f32.mrb[0].mxu0
  %v1079 = vadd.f32 %v894, %v1078
  %v1080 = vpop.f32.mrb[0].mxu0
  %1081 = vmatprep.mubr.bf16.mxu0 0
  %1082 = vmatmul.mubr.bf16.gmra.mrb[0].mxu0 %v952
  %v1083 = vpop.f32.mrb[0].mxu0
  %v1084 = vadd.f32 %v894, %v1083
  %v1085 = vpop.f32.mrb[0].mxu0
  %v1086 = vpop.f32.mrb[0].mxu0
  %v1087 = vadd.f32 %v894, %v1086
  %v1088 = vpop.f32.mrb[0].mxu0
  %1089 = vmatprep.mubr.bf16.mxu0 0
  %1090 = vmatmul.mubr.bf16.gmra.mrb[0].mxu0 %v955
  %v1091 = vpop.f32.mrb[0].mxu0
  %v1092 = vadd.f32 %v894, %v1091
  %v1093 = vpop.f32.mrb[0].mxu0
  %v1094 = vpop.f32.mrb[0].mxu0
  %v1095 = vadd.f32 %v894, %v1094
  %v1096 = vpop.f32.mrb[0].mxu0
  %1097 = vmatprep.mubr.bf16.mxu0 0
  %1098 = vmatmul.mubr.bf16.gmra.mrb[0].mxu0 %v958
  %v1099 = vpop.f32.mrb[0].mxu0
  %v1100 = vadd.f32 %v894, %v1099
  %v1101 = vpop.f32.mrb[0].mxu0
  %v1102 = vpop.f32.mrb[0].mxu0
  %v1103 = vadd.f32 %v894, %v1102
  %v1104 = vpop.f32.mrb[0].mxu0
  %1105 = vmatprep.mubr.bf16.mxu0 0
  %1106 = vmatmul.mubr.bf16.gmra.mrb[0].mxu0 %v961
  %v1107 = vpop.f32.mrb[0].mxu0
  %v1108 = vadd.f32 %v894, %v1107
  %v1109 = vpop.f32.mrb[0].mxu0
  %v1110 = vpop.f32.mrb[0].mxu0
  %v1111 = vadd.f32 %v894, %v1110
  %v1112 = vpop.f32.mrb[0].mxu0
  %1113 = vmatprep.mubr.bf16.mxu0 0
  %1114 = vmatmul.mubr.bf16.gmra.mrb[0].mxu0 %v964
  %v1115 = vpop.f32.mrb[0].mxu0
  %v1116 = vadd.f32 %v894, %v1115
  %v1117 = vpop.f32.mrb[0].mxu0
  %v1118 = vpop.f32.mrb[0].mxu0
  %v1119 = vadd.f32 %v894, %v1118
  %v1120 = vpop.f32.mrb[0].mxu0
  %1121 = vmatprep.mubr.bf16.mxu0 0
  %1122 = vmatmul.mubr.bf16.gmra.mrb[0].mxu0 %v967
  %v1123 = vpop.f32.mrb[0].mxu0
  %v1124 = vadd.f32 %v894, %v1123
  %v1125 = vpop.f32.mrb[0].mxu0
  %v1126 = vpop.f32.mrb[0].mxu0
  %v1127 = vadd.f32 %v894, %v1126
  %v1128 = vpop.f32.mrb[0].mxu0
  %1129 = vdwg.mxu0
  %1130 = vst.msk [vmem:[%s7] sm:$0xff] %vm147, %v1004
  %1131 = vst.msk [vmem:[%s7 + $0x8] sm:$0xff] %vm147, %v1007
  %1132 = vst.msk [vmem:[%s7 + $0x10] sm:$0xff] %vm147, %v1012
  %1133 = vst.msk [vmem:[%s7 + $0x18] sm:$0xff] %vm147, %v1015
  %1134 = vst.msk [vmem:[%s7 + $0x20] sm:$0xff] %vm147, %v1020
  %1135 = vst.msk [vmem:[%s7 + $0x28] sm:$0xff] %vm147, %v1023
  %1136 = vst.msk [vmem:[%s7 + $0x30] sm:$0xff] %vm147, %v1028
  %1137 = vst.msk [vmem:[%s7 + $0x38] sm:$0xff] %vm147, %v1031
  %1138 = vst.msk [vmem:[%s7 + $0x40] sm:$0xff] %vm147, %v1036
  %1139 = vst.msk [vmem:[%s7 + $0x48] sm:$0xff] %vm147, %v1039
  %1140 = vst.msk [vmem:[%s7 + $0x50] sm:$0xff] %vm147, %v1044
  %1141 = vst.msk [vmem:[%s7 + $0x58] sm:$0xff] %vm147, %v1047
  %1142 = vst.msk [vmem:[%s7 + $0x60] sm:$0xff] %vm147, %v1052
  %1143 = vst.msk [vmem:[%s7 + $0x68] sm:$0xff] %vm147, %v1055
  %1144 = vst.msk [vmem:[%s7 + $0x70] sm:$0xff] %vm147, %v1060
  %1145 = vst.msk [vmem:[%s7 + $0x78] sm:$0xff] %vm147, %v1063
  %1146 = vst.msk [vmem:[%s7 + $0x80] sm:$0xff] %vm147, %v1068
  %1147 = vst.msk [vmem:[%s7 + $0x88] sm:$0xff] %vm147, %v1071
  %1148 = vst.msk [vmem:[%s7 + $0x90] sm:$0xff] %vm147, %v1076
  %1149 = vst.msk [vmem:[%s7 + $0x98] sm:$0xff] %vm147, %v1079
  %1150 = vst.msk [vmem:[%s7 + $0xa0] sm:$0xff] %vm147, %v1084
  %1151 = vst.msk [vmem:[%s7 + $0xa8] sm:$0xff] %vm147, %v1087
  %1152 = vst.msk [vmem:[%s7 + $0xb0] sm:$0xff] %vm147, %v1092
  %1153 = vst.msk [vmem:[%s7 + $0xb8] sm:$0xff] %vm147, %v1095
  %1154 = vst.msk [vmem:[%s7 + $0xc0] sm:$0xff] %vm147, %v1100
  %1155 = vst.msk [vmem:[%s7 + $0xc8] sm:$0xff] %vm147, %v1103
  %1156 = vst.msk [vmem:[%s7 + $0xd0] sm:$0xff] %vm147, %v1108
  %1157 = vst.msk [vmem:[%s7 + $0xd8] sm:$0xff] %vm147, %v1111
  %1158 = vst.msk [vmem:[%s7 + $0xe0] sm:$0xff] %vm147, %v1116
  %1159 = vst.msk [vmem:[%s7 + $0xe8] sm:$0xff] %vm147, %v1119
  %1160 = vst.msk [vmem:[%s7 + $0xf0] sm:$0xff] %vm147, %v1124
  %1161 = vst.msk [vmem:[%s7 + $0xf8] sm:$0xff] %vm147, %v1127
  // Predicated region
  $region30: #{tpu_custom_call.1} parent=0 // pred_check
    _
  $region31: #{tpu_custom_call.1} parent=0 // pred_check_branch
    %1163 = sbr.rel (0) target = $region33
  $region32: #{tpu_custom_call.1} parent=0 // pred_region
    _
  $region33: #{tpu_custom_call.1} parent=0 // pred_fallthru
    _
  // Predicated region
  $region34: #{tpu_custom_call.1} parent=0 // pred_check
    _
  $region35: #{tpu_custom_call.1} parent=0 // pred_check_branch
    %1165 = sbr.rel (0) target = $region37
  $region36: #{tpu_custom_call.1} parent=0 // pred_region
    _
  $region37: #{tpu_custom_call.1} parent=0 // pred_fallthru
    _

// kernel: tpu_custom_call.1
$region0: #{tpu_custom_call.1}
  #allocation0 [shape = 'u32[]', space=smem, size = 0x4, offset = 0x4, fixed_abs, tag = 'smem constant byte address 0x4 - core index']
  #allocation1 [shape = 'u32[144,128]{1,0:T(1,128)}', space=vmem, size = 0x12000, scoped, tag = 'internal scratch']
  %s0 = inlined_call_operand.vmem [shape: bf16[256,8], index: 0, kind: input, shape index: {}]
  %s1 = inlined_call_operand.vmem [shape: bf16[8,128], index: 1, kind: input, shape index: {}]
  %s2 = inlined_call_operand.vmem [shape: f32[1,128], index: 2, kind: input, shape index: {}]
  %s3 = inlined_call_operand.vmem [shape: bf16[1,128,64], index: 3, kind: input, shape index: {}]
  %s4 = inlined_call_operand.vmem [shape: f32[1,64], index: 4, kind: input, shape index: {}]
  %s5 = inlined_call_operand.vmem [shape: bf16[1,64,8], index: 5, kind: input, shape index: {}]
  %s6 = inlined_call_operand.vmem [shape: f32[1,8], index: 6, kind: input, shape index: {}]
  %s7 = inlined_call_operand.vmem [shape: f32[256,8], index: 7, kind: output, shape index: {}]
  %s8 = sld [smem:[#allocation0]]
  $region38: #{tpu_custom_call.1} parent=0
    _
  %s10 = ssub.s32 1, %s8
  %s11 = scalar_select 0, %s10, %s8
  // Predicated region
  $region2: #{tpu_custom_call.1} parent=0 // pred_check
    _
  $region3: #{tpu_custom_call.1} parent=0 // pred_check_branch
    %13 = sbr.rel (0) target = $region5
  $region4: #{tpu_custom_call.1} parent=0 // pred_region
    _
  $region5: #{tpu_custom_call.1} parent=0 // pred_fallthru
    _
  // Predicated region
  $region6: #{tpu_custom_call.1} parent=0 // pred_check
    _
  $region7: #{tpu_custom_call.1} parent=0 // pred_check_branch
    %15 = sbr.rel (0) target = $region9
  $region8: #{tpu_custom_call.1} parent=0 // pred_region
    _
  $region9: #{tpu_custom_call.1} parent=0 // pred_fallthru
    _
  // Predicated region
  $region10: #{tpu_custom_call.1} parent=0 // pred_check
    _
  $region11: #{tpu_custom_call.1} parent=0 // pred_check_branch
    %17 = sbr.rel (0) target = $region13
  $region12: #{tpu_custom_call.1} parent=0 // pred_region
    _
  $region13: #{tpu_custom_call.1} parent=0 // pred_fallthru
    _
  // Predicated region
  $region14: #{tpu_custom_call.1} parent=0 // pred_check
    _
  $region15: #{tpu_custom_call.1} parent=0 // pred_check_branch
    %19 = sbr.rel (0) target = $region17
  $region16: #{tpu_custom_call.1} parent=0 // pred_region
    _
  $region17: #{tpu_custom_call.1} parent=0 // pred_fallthru
    _
  // Predicated region
  $region18: #{tpu_custom_call.1} parent=0 // pred_check
    _
  $region19: #{tpu_custom_call.1} parent=0 // pred_check_branch
    %21 = sbr.rel (0) target = $region21
  $region20: #{tpu_custom_call.1} parent=0 // pred_region
    _
  $region21: #{tpu_custom_call.1} parent=0 // pred_fallthru
    _
  // Predicated region
  $region22: #{tpu_custom_call.1} parent=0 // pred_check
    _
  $region23: #{tpu_custom_call.1} parent=0 // pred_check_branch
    %23 = sbr.rel (0) target = $region25
  $region24: #{tpu_custom_call.1} parent=0 // pred_region
    _
  $region25: #{tpu_custom_call.1} parent=0 // pred_fallthru
    _
  // Predicated region
  $region26: #{tpu_custom_call.1} parent=0 // pred_check
    _
  $region27: #{tpu_custom_call.1} parent=0 // pred_check_branch
    %25 = sbr.rel (0) target = $region29
  $region28: #{tpu_custom_call.1} parent=0 // pred_region
    _
  $region29: #{tpu_custom_call.1} parent=0 // pred_fallthru
    _
  %v27 = vld [vmem:[%s0] sm:$0xf]
  %v28 = vld [vmem:[%s0 + $0x4] sm:$0xf]
  %v29 = vld [vmem:[%s0 + $0x8] sm:$0xf]
  %v30 = vld [vmem:[%s0 + $0xc] sm:$0xf]
  %v31 = vld [vmem:[%s0 + $0x10] sm:$0xf]
  %v32 = vld [vmem:[%s0 + $0x14] sm:$0xf]
  %v33 = vld [vmem:[%s0 + $0x18] sm:$0xf]
  %v34 = vld [vmem:[%s0 + $0x1c] sm:$0xf]
  %v35 = vld [vmem:[%s0 + $0x20] sm:$0xf]
  %v36 = vld [vmem:[%s0 + $0x24] sm:$0xf]
  %v37 = vld [vmem:[%s0 + $0x28] sm:$0xf]
  %v38 = vld [vmem:[%s0 + $0x2c] sm:$0xf]
  %v39 = vld [vmem:[%s0 + $0x30] sm:$0xf]
  %v40 = vld [vmem:[%s0 + $0x34] sm:$0xf]
  %v41 = vld [vmem:[%s0 + $0x38] sm:$0xf]
  %v42 = vld [vmem:[%s0 + $0x3c] sm:$0xf]
  %v43 = vld [vmem:[%s0 + $0x40] sm:$0xf]
  %v44 = vld [vmem:[%s0 + $0x44] sm:$0xf]
  %v45 = vld [vmem:[%s0 + $0x48] sm:$0xf]
  %v46 = vld [vmem:[%s0 + $0x4c] sm:$0xf]
  %v47 = vld [vmem:[%s0 + $0x50] sm:$0xf]
  %v48 = vld [vmem:[%s0 + $0x54] sm:$0xf]
  %v49 = vld [vmem:[%s0 + $0x58] sm:$0xf]
  %v50 = vld [vmem:[%s0 + $0x5c] sm:$0xf]
  %v51 = vld [vmem:[%s0 + $0x60] sm:$0xf]
  %v52 = vld [vmem:[%s0 + $0x64] sm:$0xf]
  %v53 = vld [vmem:[%s0 + $0x68] sm:$0xf]
  %v54 = vld [vmem:[%s0 + $0x6c] sm:$0xf]
  %v55 = vld [vmem:[%s0 + $0x70] sm:$0xf]
  %v56 = vld [vmem:[%s0 + $0x74] sm:$0xf]
  %v57 = vld [vmem:[%s0 + $0x78] sm:$0xf]
  %v58 = vld [vmem:[%s0 + $0x7c] sm:$0xf]
  %v59 = vld [vmem:[%s1] sm:$0xf]
  %v60 = vld [vmem:[%s2] sm:$0x1]
  %v62 = vlaneseq
  %v63 = vshrl.u32 %v62, 7
  %v64 = vsub.s32 0, %v63
  %v65 = vrot.slane %v60, %v64
  %v99 = vunpack.c.l.b16 %v27
  %v100 = vunpack.c.l.b16 %v28
  %v101 = vunpack.c.l.b16 %v29
  %v102 = vunpack.c.l.b16 %v30
  %v103 = vunpack.c.l.b16 %v31
  %v104 = vunpack.c.l.b16 %v32
  %v105 = vunpack.c.l.b16 %v33
  %v106 = vunpack.c.l.b16 %v34
  %v107 = vunpack.c.l.b16 %v35
  %v108 = vunpack.c.l.b16 %v36
  %v109 = vunpack.c.l.b16 %v37
  %v110 = vunpack.c.l.b16 %v38
  %v111 = vunpack.c.l.b16 %v39
  %v112 = vunpack.c.l.b16 %v40
  %v113 = vunpack.c.l.b16 %v41
  %v114 = vunpack.c.l.b16 %v42
  %v115 = vunpack.c.l.b16 %v43
  %v116 = vunpack.c.l.b16 %v44
  %v117 = vunpack.c.l.b16 %v45
  %v118 = vunpack.c.l.b16 %v46
  %v119 = vunpack.c.l.b16 %v47
  %v120 = vunpack.c.l.b16 %v48
  %v121 = vunpack.c.l.b16 %v49
  %v122 = vunpack.c.l.b16 %v50
  %v123 = vunpack.c.l.b16 %v51
  %v124 = vunpack.c.l.b16 %v52
  %v125 = vunpack.c.l.b16 %v53
  %v126 = vunpack.c.l.b16 %v54
  %v127 = vunpack.c.l.b16 %v55
  %v128 = vunpack.c.l.b16 %v56
  %v129 = vunpack.c.l.b16 %v57
  %v130 = vunpack.c.l.b16 %v58
  %v131 = vpack.c.b16 %v100, %v99
  %v132 = vpack.c.b16 %v102, %v101
  %v133 = vpack.c.b16 %v104, %v103
  %v134 = vpack.c.b16 %v106, %v105
  %v135 = vpack.c.b16 %v108, %v107
  %v136 = vpack.c.b16 %v110, %v109
  %v137 = vpack.c.b16 %v112, %v111
  %v138 = vpack.c.b16 %v114, %v113
  %v139 = vpack.c.b16 %v116, %v115
  %v140 = vpack.c.b16 %v118, %v117
  %v141 = vpack.c.b16 %v120, %v119
  %v142 = vpack.c.b16 %v122, %v121
  %v143 = vpack.c.b16 %v124, %v123
  %v144 = vpack.c.b16 %v126, %v125
  %v145 = vpack.c.b16 %v128, %v127
  %v146 = vpack.c.b16 %v130, %v129
  %vm147 = vcmask 64512
  %v149 = vsel %vm147, %v131, 0
  %v152 = vsel %vm147, %v132, 0
  %v155 = vsel %vm147, %v133, 0
  %v158 = vsel %vm147, %v134, 0
  %v161 = vsel %vm147, %v135, 0
  %v164 = vsel %vm147, %v136, 0
  %v167 = vsel %vm147, %v137, 0
  %v170 = vsel %vm147, %v138, 0
  %v173 = vsel %vm147, %v139, 0
  %v176 = vsel %vm147, %v140, 0
  %v179 = vsel %vm147, %v141, 0
  %v182 = vsel %vm147, %v142, 0
  %v185 = vsel %vm147, %v143, 0
  %v188 = vsel %vm147, %v144, 0
  %v191 = vsel %vm147, %v145, 0
  %v194 = vsel %vm147, %v146, 0
  %vm196 = vcmask 1043456
  %v198 = vsel %vm196, %v59, 0
  %200 = vmatprep.subr.bf16.mxu0 0
  %201 = vmatpush1.bf16.msra.mxu0 %v198
  %202 = vmatprep.subr.bf16.mxu0 0
  %203 = vmatpush1.bf16.msra.mxu0 0
  %204 = vmatprep.subr.bf16.mxu0 0
  %205 = vmatpush1.bf16.msra.mxu0 0
  %206 = vmatprep.subr.bf16.mxu0 0
  %207 = vmatpush1.bf16.msra.mxu0 0
  %208 = vmatprep.subr.bf16.mxu0 0
  %209 = vmatpush1.bf16.msra.mxu0 0
  %210 = vmatprep.subr.bf16.mxu0 0
  %211 = vmatpush1.bf16.msra.mxu0 0
  %212 = vmatprep.subr.bf16.mxu0 0
  %213 = vmatpush1.bf16.msra.mxu0 0
  %214 = vmatprep.subr.bf16.mxu0 0
  %215 = vmatpush1.bf16.msra.mxu0 0
  %216 = vmatprep.subr.bf16.mxu0 0
  %217 = vmatpush1.bf16.msra.mxu0 0
  %218 = vmatprep.subr.bf16.mxu0 0
  %219 = vmatpush1.bf16.msra.mxu0 0
  %220 = vmatprep.subr.bf16.mxu0 0
  %221 = vmatpush1.bf16.msra.mxu0 0
  %222 = vmatprep.subr.bf16.mxu0 0
  %223 = vmatpush1.bf16.msra.mxu0 0
  %224 = vmatprep.subr.bf16.mxu0 0
  %225 = vmatpush1.bf16.msra.mxu0 0
  %226 = vmatprep.subr.bf16.mxu0 0
  %227 = vmatpush1.bf16.msra.mxu0 0
  %228 = vmatprep.subr.bf16.mxu0 0
  %229 = vmatpush1.bf16.msra.mxu0 0
  %230 = vmatprep.subr.bf16.mxu0 0
  %231 = vmatpush1.bf16.msra.mxu0 0
  %232 = vmatprep.mubr.bf16.mxu0 0
  %233 = vmatmul.mubr.bf16.gmra.mrb[0].mxu0 %v149
  %v234 = vpop.f32.mrb[0].mxu0
  %v235 = vadd.f32 %v65, %v234
  %v236 = vpop.f32.mrb[0].mxu0
  %v237 = vpop.f32.mrb[0].mxu0
  %v238 = vadd.f32 %v65, %v237
  %v239 = vpop.f32.mrb[0].mxu0
  %240 = vmatprep.mubr.bf16.mxu0 0
  %241 = vmatmul.mubr.bf16.gmra.mrb[0].mxu0 %v152
  %v242 = vpop.f32.mrb[0].mxu0
  %v243 = vadd.f32 %v65, %v242
  %v244 = vpop.f32.mrb[0].mxu0
  %v245 = vpop.f32.mrb[0].mxu0
  %v246 = vadd.f32 %v65, %v245
  %v247 = vpop.f32.mrb[0].mxu0
  %248 = vmatprep.mubr.bf16.mxu0 0
  %249 = vmatmul.mubr.bf16.gmra.mrb[0].mxu0 %v155
  %v250 = vpop.f32.mrb[0].mxu0
  %v251 = vadd.f32 %v65, %v250
  %v252 = vpop.f32.mrb[0].mxu0
  %v253 = vpop.f32.mrb[0].mxu0
  %v254 = vadd.f32 %v65, %v253
  %v255 = vpop.f32.mrb[0].mxu0
  %256 = vmatprep.mubr.bf16.mxu0 0
  %257 = vmatmul.mubr.bf16.gmra.mrb[0].mxu0 %v158
  %v258 = vpop.f32.mrb[0].mxu0
  %v259 = vadd.f32 %v65, %v258
  %v260 = vpop.f32.mrb[0].mxu0
  %v261 = vpop.f32.mrb[0].mxu0
  %v262 = vadd.f32 %v65, %v261
  %v263 = vpop.f32.mrb[0].mxu0
  %264 = vmatprep.mubr.bf16.mxu0 0
  %265 = vmatmul.mubr.bf16.gmra.mrb[0].mxu0 %v161
  %v266 = vpop.f32.mrb[0].mxu0
  %v267 = vadd.f32 %v65, %v266
  %v268 = vpop.f32.mrb[0].mxu0
  %v269 = vpop.f32.mrb[0].mxu0
  %v270 = vadd.f32 %v65, %v269
  %v271 = vpop.f32.mrb[0].mxu0
  %272 = vmatprep.mubr.bf16.mxu0 0
  %273 = vmatmul.mubr.bf16.gmra.mrb[0].mxu0 %v164
  %v274 = vpop.f32.mrb[0].mxu0
  %v275 = vadd.f32 %v65, %v274
  %v276 = vpop.f32.mrb[0].mxu0
  %v277 = vpop.f32.mrb[0].mxu0
  %v278 = vadd.f32 %v65, %v277
  %v279 = vpop.f32.mrb[0].mxu0
  %280 = vmatprep.mubr.bf16.mxu0 0
  %281 = vmatmul.mubr.bf16.gmra.mrb[0].mxu0 %v167
  %v282 = vpop.f32.mrb[0].mxu0
  %v283 = vadd.f32 %v65, %v282
  %v284 = vpop.f32.mrb[0].mxu0
  %v285 = vpop.f32.mrb[0].mxu0
  %v286 = vadd.f32 %v65, %v285
  %v287 = vpop.f32.mrb[0].mxu0
  %288 = vmatprep.mubr.bf16.mxu0 0
  %289 = vmatmul.mubr.bf16.gmra.mrb[0].mxu0 %v170
  %v290 = vpop.f32.mrb[0].mxu0
  %v291 = vadd.f32 %v65, %v290
  %v292 = vpop.f32.mrb[0].mxu0
  %v293 = vpop.f32.mrb[0].mxu0
  %v294 = vadd.f32 %v65, %v293
  %v295 = vpop.f32.mrb[0].mxu0
  %296 = vmatprep.mubr.bf16.mxu0 0
  %297 = vmatmul.mubr.bf16.gmra.mrb[0].mxu0 %v173
  %v298 = vpop.f32.mrb[0].mxu0
  %v299 = vadd.f32 %v65, %v298
  %v300 = vpop.f32.mrb[0].mxu0
  %v301 = vpop.f32.mrb[0].mxu0
  %v302 = vadd.f32 %v65, %v301
  %v303 = vpop.f32.mrb[0].mxu0
  %304 = vmatprep.mubr.bf16.mxu0 0
  %305 = vmatmul.mubr.bf16.gmra.mrb[0].mxu0 %v176
  %v306 = vpop.f32.mrb[0].mxu0
  %v307 = vadd.f32 %v65, %v306
  %v308 = vpop.f32.mrb[0].mxu0
  %v309 = vpop.f32.mrb[0].mxu0
  %v310 = vadd.f32 %v65, %v309
  %v311 = vpop.f32.mrb[0].mxu0
  %312 = vmatprep.mubr.bf16.mxu0 0
  %313 = vmatmul.mubr.bf16.gmra.mrb[0].mxu0 %v179
  %v314 = vpop.f32.mrb[0].mxu0
  %v315 = vadd.f32 %v65, %v314
  %v316 = vpop.f32.mrb[0].mxu0
  %v317 = vpop.f32.mrb[0].mxu0
  %v318 = vadd.f32 %v65, %v317
  %v319 = vpop.f32.mrb[0].mxu0
  %320 = vmatprep.mubr.bf16.mxu0 0
  %321 = vmatmul.mubr.bf16.gmra.mrb[0].mxu0 %v182
  %v322 = vpop.f32.mrb[0].mxu0
  %v323 = vadd.f32 %v65, %v322
  %v324 = vpop.f32.mrb[0].mxu0
  %v325 = vpop.f32.mrb[0].mxu0
  %v326 = vadd.f32 %v65, %v325
  %v327 = vpop.f32.mrb[0].mxu0
  %328 = vmatprep.mubr.bf16.mxu0 0
  %329 = vmatmul.mubr.bf16.gmra.mrb[0].mxu0 %v185
  %v330 = vpop.f32.mrb[0].mxu0
  %v331 = vadd.f32 %v65, %v330
  %v332 = vpop.f32.mrb[0].mxu0
  %v333 = vpop.f32.mrb[0].mxu0
  %v334 = vadd.f32 %v65, %v333
  %v335 = vpop.f32.mrb[0].mxu0
  %336 = vmatprep.mubr.bf16.mxu0 0
  %337 = vmatmul.mubr.bf16.gmra.mrb[0].mxu0 %v188
  %v338 = vpop.f32.mrb[0].mxu0
  %v339 = vadd.f32 %v65, %v338
  %v340 = vpop.f32.mrb[0].mxu0
  %v341 = vpop.f32.mrb[0].mxu0
  %v342 = vadd.f32 %v65, %v341
  %v343 = vpop.f32.mrb[0].mxu0
  %344 = vmatprep.mubr.bf16.mxu0 0
  %345 = vmatmul.mubr.bf16.gmra.mrb[0].mxu0 %v191
  %v346 = vpop.f32.mrb[0].mxu0
  %v347 = vadd.f32 %v65, %v346
  %v348 = vpop.f32.mrb[0].mxu0
  %v349 = vpop.f32.mrb[0].mxu0
  %v350 = vadd.f32 %v65, %v349
  %v351 = vpop.f32.mrb[0].mxu0
  %352 = vmatprep.mubr.bf16.mxu0 0
  %353 = vmatmul.mubr.bf16.gmra.mrb[0].mxu0 %v194
  %v354 = vpop.f32.mrb[0].mxu0
  %v355 = vadd.f32 %v65, %v354
  %v356 = vpop.f32.mrb[0].mxu0
  %v357 = vpop.f32.mrb[0].mxu0
  %v358 = vadd.f32 %v65, %v357
  %v359 = vpop.f32.mrb[0].mxu0
  %360 = vdwg.mxu0
  %v361 = vmul.f32 %v235, 0.5
  %v362 = vmul.f32 %v238, 0.5
  %v363 = vmul.f32 %v243, 0.5
  %v364 = vmul.f32 %v246, 0.5
  %v365 = vmul.f32 %v251, 0.5
  %v366 = vmul.f32 %v254, 0.5
  %v367 = vmul.f32 %v259, 0.5
  %v368 = vmul.f32 %v262, 0.5
  %v369 = vmul.f32 %v267, 0.5
  %v370 = vmul.f32 %v270, 0.5
  %v371 = vmul.f32 %v275, 0.5
  %v372 = vmul.f32 %v278, 0.5
  %v373 = vmul.f32 %v283, 0.5
  %v374 = vmul.f32 %v286, 0.5
  %v375 = vmul.f32 %v291, 0.5
  %v376 = vmul.f32 %v294, 0.5
  %v377 = vmul.f32 %v299, 0.5
  %v378 = vmul.f32 %v302, 0.5
  %v379 = vmul.f32 %v307, 0.5
  %v380 = vmul.f32 %v310, 0.5
  %v381 = vmul.f32 %v315, 0.5
  %v382 = vmul.f32 %v318, 0.5
  %v383 = vmul.f32 %v323, 0.5
  %v384 = vmul.f32 %v326, 0.5
  %v385 = vmul.f32 %v331, 0.5
  %v386 = vmul.f32 %v334, 0.5
  %v387 = vmul.f32 %v339, 0.5
  %v388 = vmul.f32 %v342, 0.5
  %v389 = vmul.f32 %v347, 0.5
  %v390 = vmul.f32 %v350, 0.5
  %v391 = vmul.f32 %v355, 0.5
  %v392 = vmul.f32 %v358, 0.5
  %v393 = vtanh.pop %v361
  %v394 = vtanh.pop %v362
  %v395 = vtanh.pop %v363
  %v396 = vtanh.pop %v364
  %v397 = vtanh.pop %v365
  %v398 = vtanh.pop %v366
  %v399 = vtanh.pop %v367
  %v400 = vtanh.pop %v368
  %v401 = vtanh.pop %v369
  %v402 = vtanh.pop %v370
  %v403 = vtanh.pop %v371
  %v404 = vtanh.pop %v372
  %v405 = vtanh.pop %v373
  %v406 = vtanh.pop %v374
  %v407 = vtanh.pop %v375
  %v408 = vtanh.pop %v376
  %v409 = vtanh.pop %v377
  %v410 = vtanh.pop %v378
  %v411 = vtanh.pop %v379
  %v412 = vtanh.pop %v380
  %v413 = vtanh.pop %v381
  %v414 = vtanh.pop %v382
  %v415 = vtanh.pop %v383
  %v416 = vtanh.pop %v384
  %v417 = vtanh.pop %v385
  %v418 = vtanh.pop %v386
  %v419 = vtanh.pop %v387
  %v420 = vtanh.pop %v388
  %v421 = vtanh.pop %v389
  %v422 = vtanh.pop %v390
  %v423 = vtanh.pop %v391
  %v424 = vtanh.pop %v392
  %v425 = vmul.f32 %v393, 0.5
  %v426 = vmul.f32 %v394, 0.5
  %v427 = vmul.f32 %v395, 0.5
  %v428 = vmul.f32 %v396, 0.5
  %v429 = vmul.f32 %v397, 0.5
  %v430 = vmul.f32 %v398, 0.5
  %v431 = vmul.f32 %v399, 0.5
  %v432 = vmul.f32 %v400, 0.5
  %v433 = vmul.f32 %v401, 0.5
  %v434 = vmul.f32 %v402, 0.5
  %v435 = vmul.f32 %v403, 0.5
  %v436 = vmul.f32 %v404, 0.5
  %v437 = vmul.f32 %v405, 0.5
  %v438 = vmul.f32 %v406, 0.5
  %v439 = vmul.f32 %v407, 0.5
  %v440 = vmul.f32 %v408, 0.5
  %v441 = vmul.f32 %v409, 0.5
  %v442 = vmul.f32 %v410, 0.5
  %v443 = vmul.f32 %v411, 0.5
  %v444 = vmul.f32 %v412, 0.5
  %v445 = vmul.f32 %v413, 0.5
  %v446 = vmul.f32 %v414, 0.5
  %v447 = vmul.f32 %v415, 0.5
  %v448 = vmul.f32 %v416, 0.5
  %v449 = vmul.f32 %v417, 0.5
  %v450 = vmul.f32 %v418, 0.5
  %v451 = vmul.f32 %v419, 0.5
  %v452 = vmul.f32 %v420, 0.5
  %v453 = vmul.f32 %v421, 0.5
  %v454 = vmul.f32 %v422, 0.5
  %v455 = vmul.f32 %v423, 0.5
  %v456 = vmul.f32 %v424, 0.5
  %v457 = vadd.f32 %v425, 0.5
  %v458 = vadd.f32 %v426, 0.5
  %v459 = vadd.f32 %v427, 0.5
  %v460 = vadd.f32 %v428, 0.5
  %v461 = vadd.f32 %v429, 0.5
  %v462 = vadd.f32 %v430, 0.5
  %v463 = vadd.f32 %v431, 0.5
  %v464 = vadd.f32 %v432, 0.5
  %v465 = vadd.f32 %v433, 0.5
  %v466 = vadd.f32 %v434, 0.5
  %v467 = vadd.f32 %v435, 0.5
  %v468 = vadd.f32 %v436, 0.5
  %v469 = vadd.f32 %v437, 0.5
  %v470 = vadd.f32 %v438, 0.5
  %v471 = vadd.f32 %v439, 0.5
  %v472 = vadd.f32 %v440, 0.5
  %v473 = vadd.f32 %v441, 0.5
  %v474 = vadd.f32 %v442, 0.5
  %v475 = vadd.f32 %v443, 0.5
  %v476 = vadd.f32 %v444, 0.5
  %v477 = vadd.f32 %v445, 0.5
  %v478 = vadd.f32 %v446, 0.5
  %v479 = vadd.f32 %v447, 0.5
  %v480 = vadd.f32 %v448, 0.5
  %v481 = vadd.f32 %v449, 0.5
  %v482 = vadd.f32 %v450, 0.5
  %v483 = vadd.f32 %v451, 0.5
  %v484 = vadd.f32 %v452, 0.5
  %v485 = vadd.f32 %v453, 0.5
  %v486 = vadd.f32 %v454, 0.5
  %v487 = vadd.f32 %v455, 0.5
  %v488 = vadd.f32 %v456, 0.5
  %v489 = vpack.c.bf16 %v458, %v457
  %v490 = vpack.c.bf16 %v460, %v459
  %v491 = vpack.c.bf16 %v462, %v461
  %v492 = vpack.c.bf16 %v464, %v463
  %v493 = vpack.c.bf16 %v466, %v465
  %v494 = vpack.c.bf16 %v468, %v467
  %v495 = vpack.c.bf16 %v470, %v469
  %v496 = vpack.c.bf16 %v472, %v471
  %v497 = vpack.c.bf16 %v474, %v473
  %v498 = vpack.c.bf16 %v476, %v475
  %v499 = vpack.c.bf16 %v478, %v477
  %v500 = vpack.c.bf16 %v480, %v479
  %v501 = vpack.c.bf16 %v482, %v481
  %v502 = vpack.c.bf16 %v484, %v483
  %v503 = vpack.c.bf16 %v486, %v485
  %v504 = vpack.c.bf16 %v488, %v487
  %v505 = vld [vmem:[%s3] sm:$0xf]
  %v506 = vld [vmem:[%s3 + $0x4] sm:$0xf]
  %v507 = vld [vmem:[%s3 + $0x8] sm:$0xf]
  %v508 = vld [vmem:[%s3 + $0xc] sm:$0xf]
  %v509 = vld [vmem:[%s3 + $0x10] sm:$0xf]
  %v510 = vld [vmem:[%s3 + $0x14] sm:$0xf]
  %v511 = vld [vmem:[%s3 + $0x18] sm:$0xf]
  %v512 = vld [vmem:[%s3 + $0x1c] sm:$0xf]
  %v513 = vld [vmem:[%s3 + $0x20] sm:$0xf]
  %v514 = vld [vmem:[%s3 + $0x24] sm:$0xf]
  %v515 = vld [vmem:[%s3 + $0x28] sm:$0xf]
  %v516 = vld [vmem:[%s3 + $0x2c] sm:$0xf]
  %v517 = vld [vmem:[%s3 + $0x30] sm:$0xf]
  %v518 = vld [vmem:[%s3 + $0x34] sm:$0xf]
  %v519 = vld [vmem:[%s3 + $0x38] sm:$0xf]
  %v520 = vld [vmem:[%s3 + $0x3c] sm:$0xf]
  %v521 = vld [vmem:[%s4] sm:$0x1]
  %v523 = vlaneseq
  %v524 = vshrl.u32 %v523, 7
  %v525 = vsub.s32 0, %v524
  %v526 = vrot.slane %v521, %v525
  %v544 = vunpack.c.l.b16 %v505
  %v545 = vunpack.c.l.b16 %v506
  %v546 = vunpack.c.l.b16 %v507
  %v547 = vunpack.c.l.b16 %v508
  %v548 = vunpack.c.l.b16 %v509
  %v549 = vunpack.c.l.b16 %v510
  %v550 = vunpack.c.l.b16 %v511
  %v551 = vunpack.c.l.b16 %v512
  %v552 = vunpack.c.l.b16 %v513
  %v553 = vunpack.c.l.b16 %v514
  %v554 = vunpack.c.l.b16 %v515
  %v555 = vunpack.c.l.b16 %v516
  %v556 = vunpack.c.l.b16 %v517
  %v557 = vunpack.c.l.b16 %v518
  %v558 = vunpack.c.l.b16 %v519
  %v559 = vunpack.c.l.b16 %v520
  %v560 = vpack.c.b16 %v545, %v544
  %v561 = vpack.c.b16 %v547, %v546
  %v562 = vpack.c.b16 %v549, %v548
  %v563 = vpack.c.b16 %v551, %v550
  %v564 = vpack.c.b16 %v553, %v552
  %v565 = vpack.c.b16 %v555, %v554
  %v566 = vpack.c.b16 %v557, %v556
  %v567 = vpack.c.b16 %v559, %v558
  %576 = vmatprep.subr.bf16.mxu0 0
  %577 = vmatpush1.bf16.msra.mxu0 %v560
  %578 = vmatprep.subr.bf16.mxu0 0
  %579 = vmatpush1.bf16.msra.mxu0 %v561
  %580 = vmatprep.subr.bf16.mxu0 0
  %581 = vmatpush1.bf16.msra.mxu0 %v562
  %582 = vmatprep.subr.bf16.mxu0 0
  %583 = vmatpush1.bf16.msra.mxu0 %v563
  %584 = vmatprep.subr.bf16.mxu0 0
  %585 = vmatpush1.bf16.msra.mxu0 %v564
  %586 = vmatprep.subr.bf16.mxu0 0
  %587 = vmatpush1.bf16.msra.mxu0 %v565
  %588 = vmatprep.subr.bf16.mxu0 0
  %589 = vmatpush1.bf16.msra.mxu0 %v566
  %590 = vmatprep.subr.bf16.mxu0 0
  %591 = vmatpush1.bf16.msra.mxu0 %v567
  %592 = vmatprep.subr.bf16.mxu0 0
  %593 = vmatpush1.bf16.msra.mxu0 0
  %594 = vmatprep.subr.bf16.mxu0 0
  %595 = vmatpush1.bf16.msra.mxu0 0
  %596 = vmatprep.subr.bf16.mxu0 0
  %597 = vmatpush1.bf16.msra.mxu0 0
  %598 = vmatprep.subr.bf16.mxu0 0
  %599 = vmatpush1.bf16.msra.mxu0 0
  %600 = vmatprep.subr.bf16.mxu0 0
  %601 = vmatpush1.bf16.msra.mxu0 0
  %602 = vmatprep.subr.bf16.mxu0 0
  %603 = vmatpush1.bf16.msra.mxu0 0
  %604 = vmatprep.subr.bf16.mxu0 0
  %605 = vmatpush1.bf16.msra.mxu0 0
  %606 = vmatprep.subr.bf16.mxu0 0
  %607 = vmatpush1.bf16.msra.mxu0 0
  %608 = vmatprep.mubr.bf16.mxu0 0
  %609 = vmatmul.mubr.bf16.gmra.mrb[0].mxu0 %v489
  %v610 = vpop.f32.mrb[0].mxu0
  %v611 = vadd.f32 %v526, %v610
  %v612 = vpop.f32.mrb[0].mxu0
  %v613 = vpop.f32.mrb[0].mxu0
  %v614 = vadd.f32 %v526, %v613
  %v615 = vpop.f32.mrb[0].mxu0
  %616 = vmatprep.mubr.bf16.mxu0 0
  %617 = vmatmul.mubr.bf16.gmra.mrb[0].mxu0 %v490
  %v618 = vpop.f32.mrb[0].mxu0
  %v619 = vadd.f32 %v526, %v618
  %v620 = vpop.f32.mrb[0].mxu0
  %v621 = vpop.f32.mrb[0].mxu0
  %v622 = vadd.f32 %v526, %v621
  %v623 = vpop.f32.mrb[0].mxu0
  %624 = vmatprep.mubr.bf16.mxu0 0
  %625 = vmatmul.mubr.bf16.gmra.mrb[0].mxu0 %v491
  %v626 = vpop.f32.mrb[0].mxu0
  %v627 = vadd.f32 %v526, %v626
  %v628 = vpop.f32.mrb[0].mxu0
  %v629 = vpop.f32.mrb[0].mxu0
  %v630 = vadd.f32 %v526, %v629
  %v631 = vpop.f32.mrb[0].mxu0
  %632 = vmatprep.mubr.bf16.mxu0 0
  %633 = vmatmul.mubr.bf16.gmra.mrb[0].mxu0 %v492
  %v634 = vpop.f32.mrb[0].mxu0
  %v635 = vadd.f32 %v526, %v634
  %v636 = vpop.f32.mrb[0].mxu0
  %v637 = vpop.f32.mrb[0].mxu0
  %v638 = vadd.f32 %v526, %v637
  %v639 = vpop.f32.mrb[0].mxu0
  %640 = vmatprep.mubr.bf16.mxu0 0
  %641 = vmatmul.mubr.bf16.gmra.mrb[0].mxu0 %v493
  %v642 = vpop.f32.mrb[0].mxu0
  %v643 = vadd.f32 %v526, %v642
  %v644 = vpop.f32.mrb[0].mxu0
  %v645 = vpop.f32.mrb[0].mxu0
  %v646 = vadd.f32 %v526, %v645
  %v647 = vpop.f32.mrb[0].mxu0
  %648 = vmatprep.mubr.bf16.mxu0 0
  %649 = vmatmul.mubr.bf16.gmra.mrb[0].mxu0 %v494
  %v650 = vpop.f32.mrb[0].mxu0
  %v651 = vadd.f32 %v526, %v650
  %v652 = vpop.f32.mrb[0].mxu0
  %v653 = vpop.f32.mrb[0].mxu0
  %v654 = vadd.f32 %v526, %v653
  %v655 = vpop.f32.mrb[0].mxu0
  %656 = vmatprep.mubr.bf16.mxu0 0
  %657 = vmatmul.mubr.bf16.gmra.mrb[0].mxu0 %v495
  %v658 = vpop.f32.mrb[0].mxu0
  %v659 = vadd.f32 %v526, %v658
  %v660 = vpop.f32.mrb[0].mxu0
  %v661 = vpop.f32.mrb[0].mxu0
  %v662 = vadd.f32 %v526, %v661
  %v663 = vpop.f32.mrb[0].mxu0
  %664 = vmatprep.mubr.bf16.mxu0 0
  %665 = vmatmul.mubr.bf16.gmra.mrb[0].mxu0 %v496
  %v666 = vpop.f32.mrb[0].mxu0
  %v667 = vadd.f32 %v526, %v666
  %v668 = vpop.f32.mrb[0].mxu0
  %v669 = vpop.f32.mrb[0].mxu0
  %v670 = vadd.f32 %v526, %v669
  %v671 = vpop.f32.mrb[0].mxu0
  %672 = vmatprep.mubr.bf16.mxu0 0
  %673 = vmatmul.mubr.bf16.gmra.mrb[0].mxu0 %v497
  %v674 = vpop.f32.mrb[0].mxu0
  %v675 = vadd.f32 %v526, %v674
  %v676 = vpop.f32.mrb[0].mxu0
  %v677 = vpop.f32.mrb[0].mxu0
  %v678 = vadd.f32 %v526, %v677
  %v679 = vpop.f32.mrb[0].mxu0
  %680 = vmatprep.mubr.bf16.mxu0 0
  %681 = vmatmul.mubr.bf16.gmra.mrb[0].mxu0 %v498
  %v682 = vpop.f32.mrb[0].mxu0
  %v683 = vadd.f32 %v526, %v682
  %v684 = vpop.f32.mrb[0].mxu0
  %v685 = vpop.f32.mrb[0].mxu0
  %v686 = vadd.f32 %v526, %v685
  %v687 = vpop.f32.mrb[0].mxu0
  %688 = vmatprep.mubr.bf16.mxu0 0
  %689 = vmatmul.mubr.bf16.gmra.mrb[0].mxu0 %v499
  %v690 = vpop.f32.mrb[0].mxu0
  %v691 = vadd.f32 %v526, %v690
  %v692 = vpop.f32.mrb[0].mxu0
  %v693 = vpop.f32.mrb[0].mxu0
  %v694 = vadd.f32 %v526, %v693
  %v695 = vpop.f32.mrb[0].mxu0
  %696 = vmatprep.mubr.bf16.mxu0 0
  %697 = vmatmul.mubr.bf16.gmra.mrb[0].mxu0 %v500
  %v698 = vpop.f32.mrb[0].mxu0
  %v699 = vadd.f32 %v526, %v698
  %v700 = vpop.f32.mrb[0].mxu0
  %v701 = vpop.f32.mrb[0].mxu0
  %v702 = vadd.f32 %v526, %v701
  %v703 = vpop.f32.mrb[0].mxu0
  %704 = vmatprep.mubr.bf16.mxu0 0
  %705 = vmatmul.mubr.bf16.gmra.mrb[0].mxu0 %v501
  %v706 = vpop.f32.mrb[0].mxu0
  %v707 = vadd.f32 %v526, %v706
  %v708 = vpop.f32.mrb[0].mxu0
  %v709 = vpop.f32.mrb[0].mxu0
  %v710 = vadd.f32 %v526, %v709
  %v711 = vpop.f32.mrb[0].mxu0
  %712 = vmatprep.mubr.bf16.mxu0 0
  %713 = vmatmul.mubr.bf16.gmra.mrb[0].mxu0 %v502
  %v714 = vpop.f32.mrb[0].mxu0
  %v715 = vadd.f32 %v526, %v714
  %v716 = vpop.f32.mrb[0].mxu0
  %v717 = vpop.f32.mrb[0].mxu0
  %v718 = vadd.f32 %v526, %v717
  %v719 = vpop.f32.mrb[0].mxu0
  %720 = vmatprep.mubr.bf16.mxu0 0
  %721 = vmatmul.mubr.bf16.gmra.mrb[0].mxu0 %v503
  %v722 = vpop.f32.mrb[0].mxu0
  %v723 = vadd.f32 %v526, %v722
  %v724 = vpop.f32.mrb[0].mxu0
  %v725 = vpop.f32.mrb[0].mxu0
  %v726 = vadd.f32 %v526, %v725
  %v727 = vpop.f32.mrb[0].mxu0
  %728 = vmatprep.mubr.bf16.mxu0 0
  %729 = vmatmul.mubr.bf16.gmra.mrb[0].mxu0 %v504
  %v730 = vpop.f32.mrb[0].mxu0
  %v731 = vadd.f32 %v526, %v730
  %v732 = vpop.f32.mrb[0].mxu0
  %v733 = vpop.f32.mrb[0].mxu0
  %v734 = vadd.f32 %v526, %v733
  %v735 = vpop.f32.mrb[0].mxu0
  %736 = vdwg.mxu0
  %v737 = vmul.f32 %v611, 0.5
  %v738 = vmul.f32 %v614, 0.5
  %v739 = vmul.f32 %v619, 0.5
  %v740 = vmul.f32 %v622, 0.5
  %v741 = vmul.f32 %v627, 0.5
  %v742 = vmul.f32 %v630, 0.5
  %v743 = vmul.f32 %v635, 0.5
  %v744 = vmul.f32 %v638, 0.5
  %v745 = vmul.f32 %v643, 0.5
  %v746 = vmul.f32 %v646, 0.5
  %v747 = vmul.f32 %v651, 0.5
  %v748 = vmul.f32 %v654, 0.5
  %v749 = vmul.f32 %v659, 0.5
  %v750 = vmul.f32 %v662, 0.5
  %v751 = vmul.f32 %v667, 0.5
  %v752 = vmul.f32 %v670, 0.5
  %v753 = vmul.f32 %v675, 0.5
  %v754 = vmul.f32 %v678, 0.5
  %v755 = vmul.f32 %v683, 0.5
  %v756 = vmul.f32 %v686, 0.5
  %v757 = vmul.f32 %v691, 0.5
  %v758 = vmul.f32 %v694, 0.5
  %v759 = vmul.f32 %v699, 0.5
  %v760 = vmul.f32 %v702, 0.5
  %v761 = vmul.f32 %v707, 0.5
  %v762 = vmul.f32 %v710, 0.5
  %v763 = vmul.f32 %v715, 0.5
  %v764 = vmul.f32 %v718, 0.5
  %v765 = vmul.f32 %v723, 0.5
  %v766 = vmul.f32 %v726, 0.5
  %v767 = vmul.f32 %v731, 0.5
  %v768 = vmul.f32 %v734, 0.5
  %v769 = vtanh.pop %v737
  %v770 = vtanh.pop %v738
  %v771 = vtanh.pop %v739
  %v772 = vtanh.pop %v740
  %v773 = vtanh.pop %v741
  %v774 = vtanh.pop %v742
  %v775 = vtanh.pop %v743
  %v776 = vtanh.pop %v744
  %v777 = vtanh.pop %v745
  %v778 = vtanh.pop %v746
  %v779 = vtanh.pop %v747
  %v780 = vtanh.pop %v748
  %v781 = vtanh.pop %v749
  %v782 = vtanh.pop %v750
  %v783 = vtanh.pop %v751
  %v784 = vtanh.pop %v752
  %v785 = vtanh.pop %v753
  %v786 = vtanh.pop %v754
  %v787 = vtanh.pop %v755
  %v788 = vtanh.pop %v756
  %v789 = vtanh.pop %v757
  %v790 = vtanh.pop %v758
  %v791 = vtanh.pop %v759
  %v792 = vtanh.pop %v760
  %v793 = vtanh.pop %v761
  %v794 = vtanh.pop %v762
  %v795 = vtanh.pop %v763
  %v796 = vtanh.pop %v764
  %v797 = vtanh.pop %v765
  %v798 = vtanh.pop %v766
  %v799 = vtanh.pop %v767
  %v800 = vtanh.pop %v768
  %v801 = vmul.f32 %v769, 0.5
  %v802 = vmul.f32 %v770, 0.5
  %v803 = vmul.f32 %v771, 0.5
  %v804 = vmul.f32 %v772, 0.5
  %v805 = vmul.f32 %v773, 0.5
  %v806 = vmul.f32 %v774, 0.5
  %v807 = vmul.f32 %v775, 0.5
  %v808 = vmul.f32 %v776, 0.5
  %v809 = vmul.f32 %v777, 0.5
  %v810 = vmul.f32 %v778, 0.5
  %v811 = vmul.f32 %v779, 0.5
  %v812 = vmul.f32 %v780, 0.5
  %v813 = vmul.f32 %v781, 0.5
  %v814 = vmul.f32 %v782, 0.5
  %v815 = vmul.f32 %v783, 0.5
  %v816 = vmul.f32 %v784, 0.5
  %v817 = vmul.f32 %v785, 0.5
  %v818 = vmul.f32 %v786, 0.5
  %v819 = vmul.f32 %v787, 0.5
  %v820 = vmul.f32 %v788, 0.5
  %v821 = vmul.f32 %v789, 0.5
  %v822 = vmul.f32 %v790, 0.5
  %v823 = vmul.f32 %v791, 0.5
  %v824 = vmul.f32 %v792, 0.5
  %v825 = vmul.f32 %v793, 0.5
  %v826 = vmul.f32 %v794, 0.5
  %v827 = vmul.f32 %v795, 0.5
  %v828 = vmul.f32 %v796, 0.5
  %v829 = vmul.f32 %v797, 0.5
  %v830 = vmul.f32 %v798, 0.5
  %v831 = vmul.f32 %v799, 0.5
  %v832 = vmul.f32 %v800, 0.5
  %v833 = vadd.f32 %v801, 0.5
  %v834 = vadd.f32 %v802, 0.5
  %v835 = vadd.f32 %v803, 0.5
  %v836 = vadd.f32 %v804, 0.5
  %v837 = vadd.f32 %v805, 0.5
  %v838 = vadd.f32 %v806, 0.5
  %v839 = vadd.f32 %v807, 0.5
  %v840 = vadd.f32 %v808, 0.5
  %v841 = vadd.f32 %v809, 0.5
  %v842 = vadd.f32 %v810, 0.5
  %v843 = vadd.f32 %v811, 0.5
  %v844 = vadd.f32 %v812, 0.5
  %v845 = vadd.f32 %v813, 0.5
  %v846 = vadd.f32 %v814, 0.5
  %v847 = vadd.f32 %v815, 0.5
  %v848 = vadd.f32 %v816, 0.5
  %v849 = vadd.f32 %v817, 0.5
  %v850 = vadd.f32 %v818, 0.5
  %v851 = vadd.f32 %v819, 0.5
  %v852 = vadd.f32 %v820, 0.5
  %v853 = vadd.f32 %v821, 0.5
  %v854 = vadd.f32 %v822, 0.5
  %v855 = vadd.f32 %v823, 0.5
  %v856 = vadd.f32 %v824, 0.5
  %v857 = vadd.f32 %v825, 0.5
  %v858 = vadd.f32 %v826, 0.5
  %v859 = vadd.f32 %v827, 0.5
  %v860 = vadd.f32 %v828, 0.5
  %v861 = vadd.f32 %v829, 0.5
  %v862 = vadd.f32 %v830, 0.5
  %v863 = vadd.f32 %v831, 0.5
  %v864 = vadd.f32 %v832, 0.5
  %v865 = vpack.c.bf16 %v834, %v833
  %v866 = vpack.c.bf16 %v836, %v835
  %v867 = vpack.c.bf16 %v838, %v837
  %v868 = vpack.c.bf16 %v840, %v839
  %v869 = vpack.c.bf16 %v842, %v841
  %v870 = vpack.c.bf16 %v844, %v843
  %v871 = vpack.c.bf16 %v846, %v845
  %v872 = vpack.c.bf16 %v848, %v847
  %v873 = vpack.c.bf16 %v850, %v849
  %v874 = vpack.c.bf16 %v852, %v851
  %v875 = vpack.c.bf16 %v854, %v853
  %v876 = vpack.c.bf16 %v856, %v855
  %v877 = vpack.c.bf16 %v858, %v857
  %v878 = vpack.c.bf16 %v860, %v859
  %v879 = vpack.c.bf16 %v862, %v861
  %v880 = vpack.c.bf16 %v864, %v863
  %v881 = vld [vmem:[%s5] sm:$0xf]
  %v882 = vld [vmem:[%s5 + $0x4] sm:$0xf]
  %v883 = vld [vmem:[%s5 + $0x8] sm:$0xf]
  %v884 = vld [vmem:[%s5 + $0xc] sm:$0xf]
  %v885 = vld [vmem:[%s5 + $0x10] sm:$0xf]
  %v886 = vld [vmem:[%s5 + $0x14] sm:$0xf]
  %v887 = vld [vmem:[%s5 + $0x18] sm:$0xf]
  %v888 = vld [vmem:[%s5 + $0x1c] sm:$0xf]
  %v889 = vld [vmem:[%s6] sm:$0x1]
  %v891 = vlaneseq
  %v892 = vshrl.u32 %v891, 7
  %v893 = vsub.s32 0, %v892
  %v894 = vrot.slane %v889, %v893
  %v904 = vunpack.c.l.b16 %v881
  %v905 = vunpack.c.l.b16 %v882
  %v906 = vunpack.c.l.b16 %v883
  %v907 = vunpack.c.l.b16 %v884
  %v908 = vunpack.c.l.b16 %v885
  %v909 = vunpack.c.l.b16 %v886
  %v910 = vunpack.c.l.b16 %v887
  %v911 = vunpack.c.l.b16 %v888
  %v912 = vpack.c.b16 %v905, %v904
  %v913 = vpack.c.b16 %v907, %v906
  %v914 = vpack.c.b16 %v909, %v908
  %v915 = vpack.c.b16 %v911, %v910
  %vm920 = vcmask 523264
  %v922 = vsel %vm920, %v865, 0
  %v925 = vsel %vm920, %v866, 0
  %v928 = vsel %vm920, %v867, 0
  %v931 = vsel %vm920, %v868, 0
  %v934 = vsel %vm920, %v869, 0
  %v937 = vsel %vm920, %v870, 0
  %v940 = vsel %vm920, %v871, 0
  %v943 = vsel %vm920, %v872, 0
  %v946 = vsel %vm920, %v873, 0
  %v949 = vsel %vm920, %v874, 0
  %v952 = vsel %vm920, %v875, 0
  %v955 = vsel %vm920, %v876, 0
  %v958 = vsel %vm920, %v877, 0
  %v961 = vsel %vm920, %v878, 0
  %v964 = vsel %vm920, %v879, 0
  %v967 = vsel %vm920, %v880, 0
  %969 = vmatprep.subr.bf16.mxu0 0
  %970 = vmatpush1.bf16.msra.mxu0 %v912
  %971 = vmatprep.subr.bf16.mxu0 0
  %972 = vmatpush1.bf16.msra.mxu0 %v913
  %973 = vmatprep.subr.bf16.mxu0 0
  %974 = vmatpush1.bf16.msra.mxu0 %v914
  %975 = vmatprep.subr.bf16.mxu0 0
  %976 = vmatpush1.bf16.msra.mxu0 %v915
  %977 = vmatprep.subr.bf16.mxu0 0
  %978 = vmatpush1.bf16.msra.mxu0 0
  %979 = vmatprep.subr.bf16.mxu0 0
  %980 = vmatpush1.bf16.msra.mxu0 0
  %981 = vmatprep.subr.bf16.mxu0 0
  %982 = vmatpush1.bf16.msra.mxu0 0
  %983 = vmatprep.subr.bf16.mxu0 0
  %984 = vmatpush1.bf16.msra.mxu0 0
  %985 = vmatprep.subr.bf16.mxu0 0
  %986 = vmatpush1.bf16.msra.mxu0 0
  %987 = vmatprep.subr.bf16.mxu0 0
  %988 = vmatpush1.bf16.msra.mxu0 0
  %989 = vmatprep.subr.bf16.mxu0 0
  %990 = vmatpush1.bf16.msra.mxu0 0
  %991 = vmatprep.subr.bf16.mxu0 0
  %992 = vmatpush1.bf16.msra.mxu0 0
  %993 = vmatprep.subr.bf16.mxu0 0
  %994 = vmatpush1.bf16.msra.mxu0 0
  %995 = vmatprep.subr.bf16.mxu0 0
  %996 = vmatpush1.bf16.msra.mxu0 0
  %997 = vmatprep.subr.bf16.mxu0 0
  %998 = vmatpush1.bf16.msra.mxu0 0
  %999 = vmatprep.subr.bf16.mxu0 0
  %1000 = vmatpush1.bf16.msra.mxu0 0
  %1001 = vmatprep.mubr.bf16.mxu0 0
  %1002 = vmatmul.mubr.bf16.gmra.mrb[0].mxu0 %v922
  %v1003 = vpop.f32.mrb[0].mxu0
  %v1004 = vadd.f32 %v894, %v1003
  %v1005 = vpop.f32.mrb[0].mxu0
  %v1006 = vpop.f32.mrb[0].mxu0
  %v1007 = vadd.f32 %v894, %v1006
  %v1008 = vpop.f32.mrb[0].mxu0
  %1009 = vmatprep.mubr.bf16.mxu0 0
  %1010 = vmatmul.mubr.bf16.gmra.mrb[0].mxu0 %v925
  %v1011 = vpop.f32.mrb[0].mxu0
  %v1012 = vadd.f32 %v894, %v1011
  %v1013 = vpop.f32.mrb[0].mxu0
  %v1014 = vpop.f32.mrb[0].mxu0
  %v1015 = vadd.f32 %v894, %v1014
  %v1016 = vpop.f32.mrb[0].mxu0
  %1017 = vmatprep.mubr.bf16.mxu0 0
  %1018 = vmatmul.mubr.bf16.gmra.mrb[0].mxu0 %v928
  %v1019 = vpop.f32.mrb[0].mxu0
  %v1020 = vadd.f32 %v894, %v1019
  %v1021 = vpop.f32.mrb[0].mxu0
  %v1022 = vpop.f32.mrb[0].mxu0
  %v1023 = vadd.f32 %v894, %v1022
  %v1024 = vpop.f32.mrb[0].mxu0
  %1025 = vmatprep.mubr.bf16.mxu0 0
  %1026 = vmatmul.mubr.bf16.gmra.mrb[0].mxu0 %v931
  %v1027 = vpop.f32.mrb[0].mxu0
  %v1028 = vadd.f32 %v894, %v1027
  %v1029 = vpop.f32.mrb[0].mxu0
  %v1030 = vpop.f32.mrb[0].mxu0
  %v1031 = vadd.f32 %v894, %v1030
  %v1032 = vpop.f32.mrb[0].mxu0
  %1033 = vmatprep.mubr.bf16.mxu0 0
  %1034 = vmatmul.mubr.bf16.gmra.mrb[0].mxu0 %v934
  %v1035 = vpop.f32.mrb[0].mxu0
  %v1036 = vadd.f32 %v894, %v1035
  %v1037 = vpop.f32.mrb[0].mxu0
  %v1038 = vpop.f32.mrb[0].mxu0
  %v1039 = vadd.f32 %v894, %v1038
  %v1040 = vpop.f32.mrb[0].mxu0
  %1041 = vmatprep.mubr.bf16.mxu0 0
  %1042 = vmatmul.mubr.bf16.gmra.mrb[0].mxu0 %v937
  %v1043 = vpop.f32.mrb[0].mxu0
  %v1044 = vadd.f32 %v894, %v1043
  %v1045 = vpop.f32.mrb[0].mxu0
  %v1046 = vpop.f32.mrb[0].mxu0
  %v1047 = vadd.f32 %v894, %v1046
  %v1048 = vpop.f32.mrb[0].mxu0
  %1049 = vmatprep.mubr.bf16.mxu0 0
  %1050 = vmatmul.mubr.bf16.gmra.mrb[0].mxu0 %v940
  %v1051 = vpop.f32.mrb[0].mxu0
  %v1052 = vadd.f32 %v894, %v1051
  %v1053 = vpop.f32.mrb[0].mxu0
  %v1054 = vpop.f32.mrb[0].mxu0
  %v1055 = vadd.f32 %v894, %v1054
  %v1056 = vpop.f32.mrb[0].mxu0
  %1057 = vmatprep.mubr.bf16.mxu0 0
  %1058 = vmatmul.mubr.bf16.gmra.mrb[0].mxu0 %v943
  %v1059 = vpop.f32.mrb[0].mxu0
  %v1060 = vadd.f32 %v894, %v1059
  %v1061 = vpop.f32.mrb[0].mxu0
  %v1062 = vpop.f32.mrb[0].mxu0
  %v1063 = vadd.f32 %v894, %v1062
  %v1064 = vpop.f32.mrb[0].mxu0
  %1065 = vmatprep.mubr.bf16.mxu0 0
  %1066 = vmatmul.mubr.bf16.gmra.mrb[0].mxu0 %v946
  %v1067 = vpop.f32.mrb[0].mxu0
  %v1068 = vadd.f32 %v894, %v1067
  %v1069 = vpop.f32.mrb[0].mxu0
  %v1070 = vpop.f32.mrb[0].mxu0
  %v1071 = vadd.f32 %v894, %v1070
  %v1072 = vpop.f32.mrb[0].mxu0
  %1073 = vmatprep.mubr.bf16.mxu0 0
  %1074 = vmatmul.mubr.bf16.gmra.mrb[0].mxu0 %v949
  %v1075 = vpop.f32.mrb[0].mxu0
  %v1076 = vadd.f32 %v894, %v1075
  %v1077 = vpop.f32.mrb[0].mxu0
  %v1078 = vpop.f32.mrb[0].mxu0
  %v1079 = vadd.f32 %v894, %v1078
  %v1080 = vpop.f32.mrb[0].mxu0
  %1081 = vmatprep.mubr.bf16.mxu0 0
  %1082 = vmatmul.mubr.bf16.gmra.mrb[0].mxu0 %v952
  %v1083 = vpop.f32.mrb[0].mxu0
  %v1084 = vadd.f32 %v894, %v1083
  %v1085 = vpop.f32.mrb[0].mxu0
  %v1086 = vpop.f32.mrb[0].mxu0
  %v1087 = vadd.f32 %v894, %v1086
  %v1088 = vpop.f32.mrb[0].mxu0
  %1089 = vmatprep.mubr.bf16.mxu0 0
  %1090 = vmatmul.mubr.bf16.gmra.mrb[0].mxu0 %v955
  %v1091 = vpop.f32.mrb[0].mxu0
  %v1092 = vadd.f32 %v894, %v1091
  %v1093 = vpop.f32.mrb[0].mxu0
  %v1094 = vpop.f32.mrb[0].mxu0
  %v1095 = vadd.f32 %v894, %v1094
  %v1096 = vpop.f32.mrb[0].mxu0
  %1097 = vmatprep.mubr.bf16.mxu0 0
  %1098 = vmatmul.mubr.bf16.gmra.mrb[0].mxu0 %v958
  %v1099 = vpop.f32.mrb[0].mxu0
  %v1100 = vadd.f32 %v894, %v1099
  %v1101 = vpop.f32.mrb[0].mxu0
  %v1102 = vpop.f32.mrb[0].mxu0
  %v1103 = vadd.f32 %v894, %v1102
  %v1104 = vpop.f32.mrb[0].mxu0
  %1105 = vmatprep.mubr.bf16.mxu0 0
  %1106 = vmatmul.mubr.bf16.gmra.mrb[0].mxu0 %v961
  %v1107 = vpop.f32.mrb[0].mxu0
  %v1108 = vadd.f32 %v894, %v1107
  %v1109 = vpop.f32.mrb[0].mxu0
  %v1110 = vpop.f32.mrb[0].mxu0
  %v1111 = vadd.f32 %v894, %v1110
  %v1112 = vpop.f32.mrb[0].mxu0
  %1113 = vmatprep.mubr.bf16.mxu0 0
  %1114 = vmatmul.mubr.bf16.gmra.mrb[0].mxu0 %v964
  %v1115 = vpop.f32.mrb[0].mxu0
  %v1116 = vadd.f32 %v894, %v1115
  %v1117 = vpop.f32.mrb[0].mxu0
  %v1118 = vpop.f32.mrb[0].mxu0
  %v1119 = vadd.f32 %v894, %v1118
  %v1120 = vpop.f32.mrb[0].mxu0
  %1121 = vmatprep.mubr.bf16.mxu0 0
  %1122 = vmatmul.mubr.bf16.gmra.mrb[0].mxu0 %v967
  %v1123 = vpop.f32.mrb[0].mxu0
  %v1124 = vadd.f32 %v894, %v1123
  %v1125 = vpop.f32.mrb[0].mxu0
  %v1126 = vpop.f32.mrb[0].mxu0
  %v1127 = vadd.f32 %v894, %v1126
  %v1128 = vpop.f32.mrb[0].mxu0
  %1129 = vdwg.mxu0
  %1130 = vst.msk [vmem:[%s7] sm:$0xff] %vm147, %v1004
  %1131 = vst.msk [vmem:[%s7 + $0x8] sm:$0xff] %vm147, %v1007
  %1132 = vst.msk [vmem:[%s7 + $0x10] sm:$0xff] %vm147, %v1012
  %1133 = vst.msk [vmem:[%s7 + $0x18] sm:$0xff] %vm147, %v1015
  %1134 = vst.msk [vmem:[%s7 + $0x20] sm:$0xff] %vm147, %v1020
  %1135 = vst.msk [vmem:[%s7 + $0x28] sm:$0xff] %vm147, %v1023
  %1136 = vst.msk [vmem:[%s7 + $0x30] sm:$0xff] %vm147, %v1028
  %1137 = vst.msk [vmem:[%s7 + $0x38] sm:$0xff] %vm147, %v1031
  %1138 = vst.msk [vmem:[%s7 + $0x40] sm:$0xff] %vm147, %v1036
  %1139 = vst.msk [vmem:[%s7 + $0x48] sm:$0xff] %vm147, %v1039
  %1140 = vst.msk [vmem:[%s7 + $0x50] sm:$0xff] %vm147, %v1044
  %1141 = vst.msk [vmem:[%s7 + $0x58] sm:$0xff] %vm147, %v1047
  %1142 = vst.msk [vmem:[%s7 + $0x60] sm:$0xff] %vm147, %v1052
  %1143 = vst.msk [vmem:[%s7 + $0x68] sm:$0xff] %vm147, %v1055
  %1144 = vst.msk [vmem:[%s7 + $0x70] sm:$0xff] %vm147, %v1060
  %1145 = vst.msk [vmem:[%s7 + $0x78] sm:$0xff] %vm147, %v1063
  %1146 = vst.msk [vmem:[%s7 + $0x80] sm:$0xff] %vm147, %v1068
  %1147 = vst.msk [vmem:[%s7 + $0x88] sm:$0xff] %vm147, %v1071
  %1148 = vst.msk [vmem:[%s7 + $0x90] sm:$0xff] %vm147, %v1076
  %1149 = vst.msk [vmem:[%s7 + $0x98] sm:$0xff] %vm147, %v1079
  %1150 = vst.msk [vmem:[%s7 + $0xa0] sm:$0xff] %vm147, %v1084
  %1151 = vst.msk [vmem:[%s7 + $0xa8] sm:$0xff] %vm147, %v1087
  %1152 = vst.msk [vmem:[%s7 + $0xb0] sm:$0xff] %vm147, %v1092
  %1153 = vst.msk [vmem:[%s7 + $0xb8] sm:$0xff] %vm147, %v1095
  %1154 = vst.msk [vmem:[%s7 + $0xc0] sm:$0xff] %vm147, %v1100
  %1155 = vst.msk [vmem:[%s7 + $0xc8] sm:$0xff] %vm147, %v1103
  %1156 = vst.msk [vmem:[%s7 + $0xd0] sm:$0xff] %vm147, %v1108
  %1157 = vst.msk [vmem:[%s7 + $0xd8] sm:$0xff] %vm147, %v1111
  %1158 = vst.msk [vmem:[%s7 + $0xe0] sm:$0xff] %vm147, %v1116
  %1159 = vst.msk [vmem:[%s7 + $0xe8] sm:$0xff] %vm147, %v1119
  %1160 = vst.msk [vmem:[%s7 + $0xf0] sm:$0xff] %vm147, %v1124
  %1161 = vst.msk [vmem:[%s7 + $0xf8] sm:$0xff] %vm147, %v1127
  // Predicated region
  $region30: #{tpu_custom_call.1} parent=0 // pred_check
    _
  $region31: #{tpu_custom_call.1} parent=0 // pred_check_branch
    %1163 = sbr.rel (0) target = $region33
  $region32: #{tpu_custom_call.1} parent=0 // pred_region
    _
  $region33: #{tpu_custom_call.1} parent=0 // pred_fallthru
    _
  // Predicated region
  $region34: #{tpu_custom_call.1} parent=0 // pred_check
    _
  $region35: #{tpu_custom_call.1} parent=0 // pred_check_branch
    %1165 = sbr.rel (0) target = $region37
  $region36: #{tpu_custom_call.1} parent=0 // pred_region
    _
  $region37: #{tpu_custom_call.1} parent=0 // pred_fallthru
    _

</llo_original>
